<compile_context>
chip_gen: v7x
topology: tpu7x:2x2x1
jax: 0.10.0
libtpu: 0.0.40
codegen_flags: <defaults>
</compile_context>

<pallas_src>
import functools

import jax
import jax.numpy as jnp
from jax.experimental import pallas as pl
from jax.experimental.pallas import tpu as pltpu


def _mha_kernel(x_ref, wq_ref, wk_ref, wv_ref, wo_ref,
                bq_ref, bk_ref, bv_ref, bo_ref,
                o_ref,
                k_cache, v_cache, ctx_ref, m_s, l_s, acc_s,
                *, n_heads, d_k, tq):
    """One (batch, query-tile) grid step.

    K/V for the whole sequence are projected once per batch row (qi == 0) and
    cached in bf16 VMEM; each query tile then runs an online-softmax sweep
    over causal kv tiles and a single fused Wo projection.
    """
    qi = pl.program_id(1)
    tk = tq  # kv tile size == query tile size -> n_kv = qi + 1

    # ---- K/V projection: once per batch row, cached as bf16 in VMEM ------
    @pl.when(qi == 0)
    def _():
        xkv = x_ref[0]                                    # (T, C) bf16
        k = jnp.dot(xkv, wk_ref[...],
                    preferred_element_type=jnp.float32) + bk_ref[...]
        v = jnp.dot(xkv, wv_ref[...],
                    preferred_element_type=jnp.float32) + bv_ref[...]
        for h in range(n_heads):
            lo = h * d_k
            k_cache[h] = k[:, lo:lo + d_k].astype(jnp.bfloat16)
            v_cache[h] = v[:, lo:lo + d_k].astype(jnp.bfloat16)

    # ---- Q projection for this tile (sliced from the resident x block) ---
    q_start = pl.multiple_of(qi * tq, tq)
    xq = x_ref.at[0][pl.ds(q_start, tq), :]               # (tq, C) bf16
    q = jnp.dot(xq, wq_ref[...],
                preferred_element_type=jnp.float32) + bq_ref[...]
    q = q * (1.0 / (float(d_k) ** 0.5))                   # fold 1/sqrt(d_k)
    q_b = q.astype(jnp.bfloat16)

    row = jax.lax.broadcasted_iota(jnp.int32, (tq, tk), 0) + qi * tq
    col = jax.lax.broadcasted_iota(jnp.int32, (tq, tk), 1)
    neg_big = jnp.float32(-1e30)     # finite -> NaN-safe even if fully masked
    n_kv = qi + 1                    # causal early exit over kv tiles

    # ---- per-head flash attention over causal kv tiles --------------------
    for h in range(n_heads):
        lo = h * d_k
        qs = q_b[:, lo:lo + d_k]                           # (tq, d_k) bf16
        k_h = k_cache.at[h]                                # (T, d_k) ref view
        v_h = v_cache.at[h]

        m_s[...] = jnp.full((tq, 1), neg_big, jnp.float32)
        l_s[...] = jnp.zeros((tq, 1), jnp.float32)
        acc_s[...] = jnp.zeros((tq, d_k), jnp.float32)

        @pl.loop(0, n_kv)
        def _(kv):
            kv_start = pl.multiple_of(kv * tk, tk)
            ks = k_h[pl.ds(kv_start, tk), :]               # (tk, d_k) bf16
            vs = v_h[pl.ds(kv_start, tk), :]
            # scores[q, k] = sum_d qs[q, d] * ks[k, d]
            s = jax.lax.dot_general(qs, ks, (((1,), (1,)), ((), ())),
                                    preferred_element_type=jnp.float32)
            s = jnp.where((col + kv * tk) <= row, s, neg_big)
            m_prev = m_s[...]
            m_new = jnp.maximum(m_prev, jnp.max(s, axis=-1, keepdims=True))
            alpha = jnp.exp(m_prev - m_new)
            p = jnp.exp(s - m_new)
            l_s[...] = alpha * l_s[...] + jnp.sum(p, axis=-1, keepdims=True)
            acc_s[...] = alpha * acc_s[...] + jnp.dot(
                p.astype(jnp.bfloat16), vs,
                preferred_element_type=jnp.float32)
            m_s[...] = m_new

        ctx = acc_s[...] * pl.reciprocal(l_s[...], approx=True)
        ctx_ref[:, lo:lo + d_k] = ctx.astype(jnp.bfloat16)

    # ---- single full-K output projection ----------------------------------
    out = jnp.dot(ctx_ref[...], wo_ref[...],
                  preferred_element_type=jnp.float32) + bo_ref[...]
    o_ref[0] = out.astype(o_ref.dtype)


def _vmem_limit_bytes():
    """~3/4 of physical VMEM (leaves Mosaic scratch headroom; v7x only has
    64 MiB per TensorCore while v5e/v6e have 128 MiB)."""
    try:
        cap = getattr(pltpu.get_tpu_info(), "vmem_capacity_bytes", None)
        if cap:
            return int(cap) * 3 // 4
    except Exception:
        pass
    return None   # fall back to the compiler default


def self_attention(x, params, *, n_heads, tq=None):
    """x: (B, T, C) float32.  params: weights (C, C) in `y = x @ W` layout,
    biases (1, C)."""
    B, T, C = x.shape
    assert C % n_heads == 0, "d_model must be divisible by n_heads"
    d_k = C // n_heads

    if tq is None:
        # Larger query tiles amortize per-grid-step overhead (sweep 256-512 on
        # v5e/v6e); keep 128-aligned, fall back to T for short sequences.
        tq = next((c for c in (512, 256, 128) if T % c == 0), T)
    assert T % tq == 0, "T must be divisible by the query tile size"
    nq = T // tq

    # bf16 weights / activations at the wrapper: halves HBM->VMEM DMA and the
    # double-buffered VMEM footprint. All accumulation stays f32 in-kernel.
    x_b = x.astype(jnp.bfloat16)
    wq = params["wq"].astype(jnp.bfloat16)
    wk = params["wk"].astype(jnp.bfloat16)
    wv = params["wv"].astype(jnp.bfloat16)
    wo = params["wo"].astype(jnp.bfloat16)
    bq, bk, bv, bo = params["bq"], params["bk"], params["bv"], params["bo"]

    kernel = functools.partial(_mha_kernel, n_heads=n_heads, d_k=d_k, tq=tq)

    weight_spec = pl.BlockSpec((C, C), lambda b, qi: (0, 0))
    bias_spec = pl.BlockSpec((1, C), lambda b, qi: (0, 0))
    x_spec = pl.BlockSpec((1, T, C), lambda b, qi: (b, 0, 0))
    out_spec = pl.BlockSpec((1, tq, C), lambda b, qi: (b, qi, 0))

    return pl.pallas_call(
        kernel,
        out_shape=jax.ShapeDtypeStruct((B, T, C), x.dtype),
        grid_spec=pltpu.PrefetchScalarGridSpec(
            num_scalar_prefetch=0,
            grid=(B, nq),
            in_specs=[x_spec,
                      weight_spec, weight_spec, weight_spec, weight_spec,
                      bias_spec, bias_spec, bias_spec, bias_spec],
            out_specs=out_spec,
            scratch_shapes=[
                pltpu.VMEM((n_heads, T, d_k), jnp.bfloat16),  # K cache
                pltpu.VMEM((n_heads, T, d_k), jnp.bfloat16),  # V cache
                pltpu.VMEM((tq, C), jnp.bfloat16),            # packed head ctx
                pltpu.VMEM((tq, 1), jnp.float32),             # online max
                pltpu.VMEM((tq, 1), jnp.float32),             # online denom
                pltpu.VMEM((tq, d_k), jnp.float32),           # online acc
            ],
        ),
        compiler_params=pltpu.CompilerParams(
            # Batch axis parallel (megacore); query-tile axis MUST be
            # arbitrary so the per-batch K/V cache is reused across tiles.
            dimension_semantics=("parallel", "arbitrary"),
            vmem_limit_bytes=_vmem_limit_bytes(),
        ),
    )(x_b, wq, wk, wv, wo, bq, bk, bv, bo)


def _reference(x, params, n_heads):
    """Pure-JAX (f32) reference mirroring the PyTorch forward."""
    B, T, C = x.shape
    d_k = C // n_heads
    q = x @ params["wq"] + params["bq"][0]
    k = x @ params["wk"] + params["bk"][0]
    v = x @ params["wv"] + params["bv"][0]
    qh = q.reshape(B, T, n_heads, d_k).transpose(0, 2, 1, 3)
    kh = k.reshape(B, T, n_heads, d_k).transpose(0, 2, 1, 3)
    vh = v.reshape(B, T, n_heads, d_k).transpose(0, 2, 1, 3)
    scores = jnp.einsum("bhqd,bhkd->bhqk", qh, kh) / (d_k ** 0.5)
    mask = jnp.triu(jnp.ones((T, T), bool), k=1)
    scores = jnp.where(mask[None, None], -jnp.inf, scores)
    attn = jax.nn.softmax(scores, axis=-1)
    out = jnp.einsum("bhqk,bhkd->bhqd", attn, vh)
    out = out.transpose(0, 2, 1, 3).reshape(B, T, C)
    return out @ params["wo"] + params["bo"][0]


if __name__ == "__main__":
    B, T, d_model, n_heads = 2, 8, 32, 4

    key = jax.random.PRNGKey(0)
    ks = jax.random.split(key, 9)
    scale = 1.0 / (d_model ** 0.5)
    params = {
        "wq": jax.random.normal(ks[0], (d_model, d_model), jnp.float32) * scale,
        "wk": jax.random.normal(ks[1], (d_model, d_model), jnp.float32) * scale,
        "wv": jax.random.normal(ks[2], (d_model, d_model), jnp.float32) * scale,
        "wo": jax.random.normal(ks[3], (d_model, d_model), jnp.float32) * scale,
        "bq": jax.random.normal(ks[4], (1, d_model), jnp.float32) * 0.01,
        "bk": jax.random.normal(ks[5], (1, d_model), jnp.float32) * 0.01,
        "bv": jax.random.normal(ks[6], (1, d_model), jnp.float32) * 0.01,
        "bo": jax.random.normal(ks[7], (1, d_model), jnp.float32) * 0.01,
    }
    x = jax.random.normal(ks[8], (B, T, d_model), jnp.float32)

    out = self_attention(x, params, n_heads=n_heads)
    out = jax.block_until_ready(out)

    ref = _reference(x, params, n_heads)
    assert out.shape == (B, T, d_model)
    # bf16 MXU operands + approx reciprocal vs. f32 reference -> looser tol.
    assert jnp.allclose(out, ref, atol=5e-2, rtol=5e-2), (
        float(jnp.max(jnp.abs(out - ref))))

    print("KERNEL_OK")
</pallas_src>

<mosaic_0001>
module attributes {stable_mosaic.version = 11 : i64} {
  func.func @_mha_kernel(%arg0: i32, %arg1: i32, %arg2: memref<1x8x32xbf16, #tpu.memory_space<vmem>>, %arg3: memref<32x32xbf16, #tpu.memory_space<vmem>>, %arg4: memref<32x32xbf16, #tpu.memory_space<vmem>>, %arg5: memref<32x32xbf16, #tpu.memory_space<vmem>>, %arg6: memref<32x32xbf16, #tpu.memory_space<vmem>>, %arg7: memref<1x32xf32, #tpu.memory_space<vmem>>, %arg8: memref<1x32xf32, #tpu.memory_space<vmem>>, %arg9: memref<1x32xf32, #tpu.memory_space<vmem>>, %arg10: memref<1x32xf32, #tpu.memory_space<vmem>>, %arg11: memref<1x8x32xf32, #tpu.memory_space<vmem>>, %arg12: memref<4x8x8xbf16, #tpu.memory_space<vmem>>, %arg13: memref<4x8x8xbf16, #tpu.memory_space<vmem>>, %arg14: memref<8x32xbf16, #tpu.memory_space<vmem>>, %arg15: memref<8x1xf32, #tpu.memory_space<vmem>>, %arg16: memref<8x1xf32, #tpu.memory_space<vmem>>, %arg17: memref<8x8xf32, #tpu.memory_space<vmem>>) attributes {dimension_semantics = [#tpu.dimension_semantics<parallel>, #tpu.dimension_semantics<arbitrary>], iteration_bounds = array<i64: 2, 1>, scalar_prefetch = 0 : i64, scratch_operands = 6 : i64, tpu.core_type = #tpu.core_type<tc>, window_params = [{transform_indices = @transform_0, window_bounds = array<i64: 1, 8, 32>}, {pipeline_mode = #tpu.pipeline_mode<synchronous>, transform_indices = @transform_1, window_bounds = array<i64: 32, 32>}, {pipeline_mode = #tpu.pipeline_mode<synchronous>, transform_indices = @transform_2, window_bounds = array<i64: 32, 32>}, {pipeline_mode = #tpu.pipeline_mode<synchronous>, transform_indices = @transform_3, window_bounds = array<i64: 32, 32>}, {pipeline_mode = #tpu.pipeline_mode<synchronous>, transform_indices = @transform_4, window_bounds = array<i64: 32, 32>}, {pipeline_mode = #tpu.pipeline_mode<synchronous>, transform_indices = @transform_5, window_bounds = array<i64: 1, 32>}, {pipeline_mode = #tpu.pipeline_mode<synchronous>, transform_indices = @transform_6, window_bounds = array<i64: 1, 32>}, {pipeline_mode = #tpu.pipeline_mode<synchronous>, transform_indices = @transform_7, window_bounds = array<i64: 1, 32>}, {pipeline_mode = #tpu.pipeline_mode<synchronous>, transform_indices = @transform_8, window_bounds = array<i64: 1, 32>}, {transform_indices = @transform_9, window_bounds = array<i64: 1, 8, 32>}]} {
    %c0_i32 = arith.constant 0 : i32
    %0 = arith.cmpi eq, %arg1, %c0_i32 : i32
    %1 = arith.extui %0 : i1 to i32
    %c0_i32_0 = arith.constant 0 : i32
    %2 = arith.cmpi ne, %1, %c0_i32_0 : i32
    scf.if %2 {
      %c0_119 = arith.constant 0 : index
      %c0_120 = arith.constant 0 : index
      %c0_121 = arith.constant 0 : index
      %112 = vector.load %arg2[%c0_119, %c0_120, %c0_121] : memref<1x8x32xbf16, #tpu.memory_space<vmem>>, vector<1x8x32xbf16>
      %113 = vector.shape_cast %112 : vector<1x8x32xbf16> to vector<8x32xbf16>
      %c0_122 = arith.constant 0 : index
      %c0_123 = arith.constant 0 : index
      %114 = vector.load %arg4[%c0_122, %c0_123] : memref<32x32xbf16, #tpu.memory_space<vmem>>, vector<32x32xbf16>
      %cst_124 = arith.constant dense<0.000000e+00> : vector<8x32xf32>
      %115 = tpu.matmul %113, %114, %cst_124 {dimension_numbers = #tpu.dot_dimension_numbers<[1], [0], [0], [1], [0, 0, 1, 1], [], []>} : vector<8x32xbf16>, vector<32x32xbf16>, vector<8x32xf32> -> vector<8x32xf32>
      %c0_125 = arith.constant 0 : index
      %c0_126 = arith.constant 0 : index
      %116 = vector.load %arg8[%c0_125, %c0_126] : memref<1x32xf32, #tpu.memory_space<vmem>>, vector<1x32xf32>
      %117 = vector.broadcast %116 : vector<1x32xf32> to vector<8x32xf32>
      %118 = arith.addf %115, %117 : vector<8x32xf32>
      %c0_127 = arith.constant 0 : index
      %c0_128 = arith.constant 0 : index
      %119 = vector.load %arg5[%c0_127, %c0_128] : memref<32x32xbf16, #tpu.memory_space<vmem>>, vector<32x32xbf16>
      %cst_129 = arith.constant dense<0.000000e+00> : vector<8x32xf32>
      %120 = tpu.matmul %113, %119, %cst_129 {dimension_numbers = #tpu.dot_dimension_numbers<[1], [0], [0], [1], [0, 0, 1, 1], [], []>} : vector<8x32xbf16>, vector<32x32xbf16>, vector<8x32xf32> -> vector<8x32xf32>
      %c0_130 = arith.constant 0 : index
      %c0_131 = arith.constant 0 : index
      %121 = vector.load %arg9[%c0_130, %c0_131] : memref<1x32xf32, #tpu.memory_space<vmem>>, vector<1x32xf32>
      %122 = vector.broadcast %121 : vector<1x32xf32> to vector<8x32xf32>
      %123 = arith.addf %120, %122 : vector<8x32xf32>
      %124 = vector.extract_strided_slice %118 {offsets = [0, 0], sizes = [8, 8], strides = [1, 1]} : vector<8x32xf32> to vector<8x8xf32>
      %125 = arith.truncf %124 : vector<8x8xf32> to vector<8x8xbf16>
      %c0_132 = arith.constant 0 : index
      %c0_133 = arith.constant 0 : index
      %c0_134 = arith.constant 0 : index
      %126 = vector.load %arg12[%c0_132, %c0_133, %c0_134] : memref<4x8x8xbf16, #tpu.memory_space<vmem>>, vector<1x8x8xbf16>
      %127 = vector.shape_cast %126 : vector<1x8x8xbf16> to vector<8x8xbf16>
      %128 = vector.shape_cast %125 : vector<8x8xbf16> to vector<1x8x8xbf16>
      tpu.vector_store %arg12[%c0_132, %c0_133, %c0_134], %128 {strides = array<i32>} : memref<4x8x8xbf16, #tpu.memory_space<vmem>>, vector<1x8x8xbf16>,
      %129 = vector.extract_strided_slice %123 {offsets = [0, 0], sizes = [8, 8], strides = [1, 1]} : vector<8x32xf32> to vector<8x8xf32>
      %130 = arith.truncf %129 : vector<8x8xf32> to vector<8x8xbf16>
      %c0_135 = arith.constant 0 : index
      %c0_136 = arith.constant 0 : index
      %c0_137 = arith.constant 0 : index
      %131 = vector.load %arg13[%c0_135, %c0_136, %c0_137] : memref<4x8x8xbf16, #tpu.memory_space<vmem>>, vector<1x8x8xbf16>
      %132 = vector.shape_cast %131 : vector<1x8x8xbf16> to vector<8x8xbf16>
      %133 = vector.shape_cast %130 : vector<8x8xbf16> to vector<1x8x8xbf16>
      tpu.vector_store %arg13[%c0_135, %c0_136, %c0_137], %133 {strides = array<i32>} : memref<4x8x8xbf16, #tpu.memory_space<vmem>>, vector<1x8x8xbf16>,
      %134 = vector.extract_strided_slice %118 {offsets = [0, 8], sizes = [8, 8], strides = [1, 1]} : vector<8x32xf32> to vector<8x8xf32>
      %135 = arith.truncf %134 : vector<8x8xf32> to vector<8x8xbf16>
      %c1 = arith.constant 1 : index
      %c0_138 = arith.constant 0 : index
      %c0_139 = arith.constant 0 : index
      %136 = vector.load %arg12[%c1, %c0_138, %c0_139] : memref<4x8x8xbf16, #tpu.memory_space<vmem>>, vector<1x8x8xbf16>
      %137 = vector.shape_cast %136 : vector<1x8x8xbf16> to vector<8x8xbf16>
      %138 = vector.shape_cast %135 : vector<8x8xbf16> to vector<1x8x8xbf16>
      tpu.vector_store %arg12[%c1, %c0_138, %c0_139], %138 {strides = array<i32>} : memref<4x8x8xbf16, #tpu.memory_space<vmem>>, vector<1x8x8xbf16>,
      %139 = vector.extract_strided_slice %123 {offsets = [0, 8], sizes = [8, 8], strides = [1, 1]} : vector<8x32xf32> to vector<8x8xf32>
      %140 = arith.truncf %139 : vector<8x8xf32> to vector<8x8xbf16>
      %c1_140 = arith.constant 1 : index
      %c0_141 = arith.constant 0 : index
      %c0_142 = arith.constant 0 : index
      %141 = vector.load %arg13[%c1_140, %c0_141, %c0_142] : memref<4x8x8xbf16, #tpu.memory_space<vmem>>, vector<1x8x8xbf16>
      %142 = vector.shape_cast %141 : vector<1x8x8xbf16> to vector<8x8xbf16>
      %143 = vector.shape_cast %140 : vector<8x8xbf16> to vector<1x8x8xbf16>
      tpu.vector_store %arg13[%c1_140, %c0_141, %c0_142], %143 {strides = array<i32>} : memref<4x8x8xbf16, #tpu.memory_space<vmem>>, vector<1x8x8xbf16>,
      %144 = vector.extract_strided_slice %118 {offsets = [0, 16], sizes = [8, 8], strides = [1, 1]} : vector<8x32xf32> to vector<8x8xf32>
      %145 = arith.truncf %144 : vector<8x8xf32> to vector<8x8xbf16>
      %c2 = arith.constant 2 : index
      %c0_143 = arith.constant 0 : index
      %c0_144 = arith.constant 0 : index
      %146 = vector.load %arg12[%c2, %c0_143, %c0_144] : memref<4x8x8xbf16, #tpu.memory_space<vmem>>, vector<1x8x8xbf16>
      %147 = vector.shape_cast %146 : vector<1x8x8xbf16> to vector<8x8xbf16>
      %148 = vector.shape_cast %145 : vector<8x8xbf16> to vector<1x8x8xbf16>
      tpu.vector_store %arg12[%c2, %c0_143, %c0_144], %148 {strides = array<i32>} : memref<4x8x8xbf16, #tpu.memory_space<vmem>>, vector<1x8x8xbf16>,
      %149 = vector.extract_strided_slice %123 {offsets = [0, 16], sizes = [8, 8], strides = [1, 1]} : vector<8x32xf32> to vector<8x8xf32>
      %150 = arith.truncf %149 : vector<8x8xf32> to vector<8x8xbf16>
      %c2_145 = arith.constant 2 : index
      %c0_146 = arith.constant 0 : index
      %c0_147 = arith.constant 0 : index
      %151 = vector.load %arg13[%c2_145, %c0_146, %c0_147] : memref<4x8x8xbf16, #tpu.memory_space<vmem>>, vector<1x8x8xbf16>
      %152 = vector.shape_cast %151 : vector<1x8x8xbf16> to vector<8x8xbf16>
      %153 = vector.shape_cast %150 : vector<8x8xbf16> to vector<1x8x8xbf16>
      tpu.vector_store %arg13[%c2_145, %c0_146, %c0_147], %153 {strides = array<i32>} : memref<4x8x8xbf16, #tpu.memory_space<vmem>>, vector<1x8x8xbf16>,
      %154 = vector.extract_strided_slice %118 {offsets = [0, 24], sizes = [8, 8], strides = [1, 1]} : vector<8x32xf32> to vector<8x8xf32>
      %155 = arith.truncf %154 : vector<8x8xf32> to vector<8x8xbf16>
      %c3 = arith.constant 3 : index
      %c0_148 = arith.constant 0 : index
      %c0_149 = arith.constant 0 : index
      %156 = vector.load %arg12[%c3, %c0_148, %c0_149] : memref<4x8x8xbf16, #tpu.memory_space<vmem>>, vector<1x8x8xbf16>
      %157 = vector.shape_cast %156 : vector<1x8x8xbf16> to vector<8x8xbf16>
      %158 = vector.shape_cast %155 : vector<8x8xbf16> to vector<1x8x8xbf16>
      tpu.vector_store %arg12[%c3, %c0_148, %c0_149], %158 {strides = array<i32>} : memref<4x8x8xbf16, #tpu.memory_space<vmem>>, vector<1x8x8xbf16>,
      %159 = vector.extract_strided_slice %123 {offsets = [0, 24], sizes = [8, 8], strides = [1, 1]} : vector<8x32xf32> to vector<8x8xf32>
      %160 = arith.truncf %159 : vector<8x8xf32> to vector<8x8xbf16>
      %c3_150 = arith.constant 3 : index
      %c0_151 = arith.constant 0 : index
      %c0_152 = arith.constant 0 : index
      %161 = vector.load %arg13[%c3_150, %c0_151, %c0_152] : memref<4x8x8xbf16, #tpu.memory_space<vmem>>, vector<1x8x8xbf16>
      %162 = vector.shape_cast %161 : vector<1x8x8xbf16> to vector<8x8xbf16>
      %163 = vector.shape_cast %160 : vector<8x8xbf16> to vector<1x8x8xbf16>
      tpu.vector_store %arg13[%c3_150, %c0_151, %c0_152], %163 {strides = array<i32>} : memref<4x8x8xbf16, #tpu.memory_space<vmem>>, vector<1x8x8xbf16>,
    } else {
    }
    %c8_i32 = arith.constant 8 : i32
    %3 = arith.muli %arg1, %c8_i32 : i32
    %4 = tpu.assume_multiple %3, 8 : i32
    %c0_i32_1 = arith.constant 0 : i32
    %c0_i32_2 = arith.constant 0 : i32
    %c0_i32_3 = arith.constant 0 : i32
    %5 = tpu.memref_slice %arg2[%c0_i32_1, %c0_i32_2, %c0_i32_3] : memref<1x8x32xbf16, #tpu.memory_space<vmem>> -> memref<1x8x32xbf16, #tpu.memory_space<vmem>>
    %6 = tpu.memref_squeeze %5 : memref<1x8x32xbf16, #tpu.memory_space<vmem>> -> memref<8x32xbf16, #tpu.memory_space<vmem>>
    %7 = arith.index_cast %4 : i32 to index
    %c0 = arith.constant 0 : index
    %8 = vector.load %6[%7, %c0] : memref<8x32xbf16, #tpu.memory_space<vmem>>, vector<8x32xbf16>
    %c0_4 = arith.constant 0 : index
    %c0_5 = arith.constant 0 : index
    %9 = vector.load %arg3[%c0_4, %c0_5] : memref<32x32xbf16, #tpu.memory_space<vmem>>, vector<32x32xbf16>
    %cst = arith.constant dense<0.000000e+00> : vector<8x32xf32>
    %10 = tpu.matmul %8, %9, %cst {dimension_numbers = #tpu.dot_dimension_numbers<[1], [0], [0], [1], [0, 0, 1, 1], [], []>} : vector<8x32xbf16>, vector<32x32xbf16>, vector<8x32xf32> -> vector<8x32xf32>
    %c0_6 = arith.constant 0 : index
    %c0_7 = arith.constant 0 : index
    %11 = vector.load %arg7[%c0_6, %c0_7] : memref<1x32xf32, #tpu.memory_space<vmem>>, vector<1x32xf32>
    %12 = vector.broadcast %11 : vector<1x32xf32> to vector<8x32xf32>
    %13 = arith.addf %10, %12 : vector<8x32xf32>
    %cst_8 = arith.constant 0.353553385 : f32
    %14 = vector.broadcast %cst_8 : f32 to vector<8x32xf32>
    %15 = arith.mulf %13, %14 : vector<8x32xf32>
    %16 = arith.truncf %15 : vector<8x32xf32> to vector<8x32xbf16>
    %17 = tpu.iota {dimensions = array<i32: 0>} : vector<8x8xi32>
    %c8_i32_9 = arith.constant 8 : i32
    %18 = arith.muli %arg1, %c8_i32_9 : i32
    %19 = vector.broadcast %18 : i32 to vector<8x8xi32>
    %20 = arith.addi %17, %19 : vector<8x8xi32>
    %21 = tpu.iota {dimensions = array<i32: 1>} : vector<8x8xi32>
    %c1_i32 = arith.constant 1 : i32
    %22 = arith.addi %arg1, %c1_i32 : i32
    %23 = vector.extract_strided_slice %16 {offsets = [0, 0], sizes = [8, 8], strides = [1, 1]} : vector<8x32xbf16> to vector<8x8xbf16>
    %cst_10 = arith.constant -1.000000e+30 : f32
    %24 = vector.broadcast %cst_10 : f32 to vector<8x1xf32>
    %c0_11 = arith.constant 0 : index
    %c0_12 = arith.constant 0 : index
    %25 = vector.load %arg15[%c0_11, %c0_12] : memref<8x1xf32, #tpu.memory_space<vmem>>, vector<8x1xf32>
    tpu.vector_store %arg15[%c0_11, %c0_12], %24 {strides = array<i32>} : memref<8x1xf32, #tpu.memory_space<vmem>>, vector<8x1xf32>,
    %cst_13 = arith.constant 0.000000e+00 : f32
    %26 = vector.broadcast %cst_13 : f32 to vector<8x1xf32>
    %c0_14 = arith.constant 0 : index
    %c0_15 = arith.constant 0 : index
    %27 = vector.load %arg16[%c0_14, %c0_15] : memref<8x1xf32, #tpu.memory_space<vmem>>, vector<8x1xf32>
    tpu.vector_store %arg16[%c0_14, %c0_15], %26 {strides = array<i32>} : memref<8x1xf32, #tpu.memory_space<vmem>>, vector<8x1xf32>,
    %cst_16 = arith.constant 0.000000e+00 : f32
    %28 = vector.broadcast %cst_16 : f32 to vector<8x8xf32>
    %c0_17 = arith.constant 0 : index
    %c0_18 = arith.constant 0 : index
    %29 = vector.load %arg17[%c0_17, %c0_18] : memref<8x8xf32, #tpu.memory_space<vmem>>, vector<8x8xf32>
    tpu.vector_store %arg17[%c0_17, %c0_18], %28 {strides = array<i32>} : memref<8x8xf32, #tpu.memory_space<vmem>>, vector<8x8xf32>,
    %c0_i32_19 = arith.constant 0 : i32
    %30 = arith.subi %22, %c0_i32_19 : i32
    %c1_i32_20 = arith.constant 1 : i32
    %c1_i32_21 = arith.constant 1 : i32
    %31 = arith.subi %c1_i32_20, %c1_i32_21 : i32
    %32 = arith.addi %30, %31 : i32
    %c1_i32_22 = arith.constant 1 : i32
    %33 = arith.divsi %32, %c1_i32_22 : i32
    %c1_i32_23 = arith.constant 1 : i32
    %c0_i32_24 = arith.constant 0 : i32
    %c0_i32_25 = arith.constant 0 : i32
    %c0_i32_26 = arith.constant 0 : i32
    %cst_27 = arith.constant -1.000000e+30 : f32
    %c0_i32_28 = arith.constant 0 : i32
    %34 = arith.subi %33, %c0_i32_28 : i32
    %35 = arith.addi %c0_i32_28, %34 : i32
    %c1_i32_29 = arith.constant 1 : i32
    scf.for %arg18 = %c0_i32_28 to %35 step %c1_i32_29  : i32 {
      %112 = arith.muli %arg18, %c1_i32_23 : i32
      %113 = arith.addi %c0_i32_24, %112 : i32
      %c8_i32_119 = arith.constant 8 : i32
      %114 = arith.muli %113, %c8_i32_119 : i32
      %115 = tpu.assume_multiple %114, 8 : i32
      %c0_i32_120 = arith.constant 0 : i32
      %c0_i32_121 = arith.constant 0 : i32
      %116 = tpu.memref_slice %arg12[%c0_i32_25, %c0_i32_120, %c0_i32_121] : memref<4x8x8xbf16, #tpu.memory_space<vmem>> -> memref<1x8x8xbf16, #tpu.memory_space<vmem>>
      %117 = tpu.memref_squeeze %116 : memref<1x8x8xbf16, #tpu.memory_space<vmem>> -> memref<8x8xbf16, #tpu.memory_space<vmem>>
      %118 = arith.index_cast %115 : i32 to index
      %c0_122 = arith.constant 0 : index
      %119 = vector.load %117[%118, %c0_122] : memref<8x8xbf16, #tpu.memory_space<vmem>>, vector<8x8xbf16>
      %c0_i32_123 = arith.constant 0 : i32
      %c0_i32_124 = arith.constant 0 : i32
      %120 = tpu.memref_slice %arg13[%c0_i32_26, %c0_i32_123, %c0_i32_124] : memref<4x8x8xbf16, #tpu.memory_space<vmem>> -> memref<1x8x8xbf16, #tpu.memory_space<vmem>>
      %121 = tpu.memref_squeeze %120 : memref<1x8x8xbf16, #tpu.memory_space<vmem>> -> memref<8x8xbf16, #tpu.memory_space<vmem>>
      %122 = arith.index_cast %115 : i32 to index
      %c0_125 = arith.constant 0 : index
      %123 = vector.load %121[%122, %c0_125] : memref<8x8xbf16, #tpu.memory_space<vmem>>, vector<8x8xbf16>
      %cst_126 = arith.constant dense<0.000000e+00> : vector<8x8xf32>
      %124 = tpu.matmul %23, %119, %cst_126 {dimension_numbers = #tpu.dot_dimension_numbers<[1], [1], [0], [0], [0, 0, 1, 0], [], []>} : vector<8x8xbf16>, vector<8x8xbf16>, vector<8x8xf32> -> vector<8x8xf32>
      %c8_i32_127 = arith.constant 8 : i32
      %125 = arith.muli %113, %c8_i32_127 : i32
      %126 = vector.broadcast %125 : i32 to vector<8x8xi32>
      %127 = arith.addi %21, %126 : vector<8x8xi32>
      %128 = arith.cmpi sle, %127, %20 : vector<8x8xi32>
      %129 = vector.broadcast %cst_27 : f32 to vector<8x8xf32>
      %130 = arith.select %128, %124, %129 : vector<8x8xi1>, vector<8x8xf32>
      %c0_128 = arith.constant 0 : index
      %c0_129 = arith.constant 0 : index
      %131 = vector.load %arg15[%c0_128, %c0_129] : memref<8x1xf32, #tpu.memory_space<vmem>>, vector<8x1xf32>
      %cst_130 = arith.constant dense<0xFF800000> : vector<8xf32>
      %132 = vector.multi_reduction <maximumf>, %130, %cst_130 [1] : vector<8x8xf32> to vector<8xf32>
      %133 = vector.shape_cast %132 : vector<8xf32> to vector<8x1xf32>
      %134 = arith.maximumf %131, %133 : vector<8x1xf32>
      %135 = arith.subf %131, %134 : vector<8x1xf32>
      %136 = math.exp %135 : vector<8x1xf32>
      %137 = vector.broadcast %134 : vector<8x1xf32> to vector<8x8xf32>
      %138 = arith.subf %130, %137 : vector<8x8xf32>
      %139 = math.exp %138 : vector<8x8xf32>
      %c0_131 = arith.constant 0 : index
      %c0_132 = arith.constant 0 : index
      %140 = vector.load %arg16[%c0_131, %c0_132] : memref<8x1xf32, #tpu.memory_space<vmem>>, vector<8x1xf32>
      %141 = arith.mulf %136, %140 : vector<8x1xf32>
      %cst_133 = arith.constant dense<0.000000e+00> : vector<8xf32>
      %142 = vector.multi_reduction <add>, %139, %cst_133 [1] : vector<8x8xf32> to vector<8xf32>
      %143 = vector.shape_cast %142 : vector<8xf32> to vector<8x1xf32>
      %144 = arith.addf %141, %143 : vector<8x1xf32>
      %c0_134 = arith.constant 0 : index
      %c0_135 = arith.constant 0 : index
      %145 = vector.load %arg16[%c0_134, %c0_135] : memref<8x1xf32, #tpu.memory_space<vmem>>, vector<8x1xf32>
      tpu.vector_store %arg16[%c0_134, %c0_135], %144 {strides = array<i32>} : memref<8x1xf32, #tpu.memory_space<vmem>>, vector<8x1xf32>,
      %c0_136 = arith.constant 0 : index
      %c0_137 = arith.constant 0 : index
      %146 = vector.load %arg17[%c0_136, %c0_137] : memref<8x8xf32, #tpu.memory_space<vmem>>, vector<8x8xf32>
      %147 = vector.broadcast %136 : vector<8x1xf32> to vector<8x8xf32>
      %148 = arith.mulf %147, %146 : vector<8x8xf32>
      %149 = arith.truncf %139 : vector<8x8xf32> to vector<8x8xbf16>
      %cst_138 = arith.constant dense<0.000000e+00> : vector<8x8xf32>
      %150 = tpu.matmul %149, %123, %cst_138 {dimension_numbers = #tpu.dot_dimension_numbers<[1], [0], [0], [1], [0, 0, 1, 1], [], []>} : vector<8x8xbf16>, vector<8x8xbf16>, vector<8x8xf32> -> vector<8x8xf32>
      %151 = arith.addf %148, %150 : vector<8x8xf32>
      %c0_139 = arith.constant 0 : index
      %c0_140 = arith.constant 0 : index
      %152 = vector.load %arg17[%c0_139, %c0_140] : memref<8x8xf32, #tpu.memory_space<vmem>>, vector<8x8xf32>
      tpu.vector_store %arg17[%c0_139, %c0_140], %151 {strides = array<i32>} : memref<8x8xf32, #tpu.memory_space<vmem>>, vector<8x8xf32>,
      %c0_141 = arith.constant 0 : index
      %c0_142 = arith.constant 0 : index
      %153 = vector.load %arg15[%c0_141, %c0_142] : memref<8x1xf32, #tpu.memory_space<vmem>>, vector<8x1xf32>
      tpu.vector_store %arg15[%c0_141, %c0_142], %134 {strides = array<i32>} : memref<8x1xf32, #tpu.memory_space<vmem>>, vector<8x1xf32>,
    }
    %c0_30 = arith.constant 0 : index
    %c0_31 = arith.constant 0 : index
    %36 = vector.load %arg17[%c0_30, %c0_31] : memref<8x8xf32, #tpu.memory_space<vmem>>, vector<8x8xf32>
    %c0_32 = arith.constant 0 : index
    %c0_33 = arith.constant 0 : index
    %37 = vector.load %arg16[%c0_32, %c0_33] : memref<8x1xf32, #tpu.memory_space<vmem>>, vector<8x1xf32>
    %38 = tpu.reciprocal %37 {approx = true} : vector<8x1xf32> -> vector<8x1xf32>
    %39 = vector.broadcast %38 : vector<8x1xf32> to vector<8x8xf32>
    %40 = arith.mulf %36, %39 : vector<8x8xf32>
    %41 = arith.truncf %40 : vector<8x8xf32> to vector<8x8xbf16>
    %c0_34 = arith.constant 0 : index
    %c0_35 = arith.constant 0 : index
    %42 = vector.load %arg14[%c0_34, %c0_35] : memref<8x32xbf16, #tpu.memory_space<vmem>>, vector<8x8xbf16>
    tpu.vector_store %arg14[%c0_34, %c0_35], %41 {strides = array<i32>} : memref<8x32xbf16, #tpu.memory_space<vmem>>, vector<8x8xbf16>,
    %43 = vector.extract_strided_slice %16 {offsets = [0, 8], sizes = [8, 8], strides = [1, 1]} : vector<8x32xbf16> to vector<8x8xbf16>
    %cst_36 = arith.constant -1.000000e+30 : f32
    %44 = vector.broadcast %cst_36 : f32 to vector<8x1xf32>
    %c0_37 = arith.constant 0 : index
    %c0_38 = arith.constant 0 : index
    %45 = vector.load %arg15[%c0_37, %c0_38] : memref<8x1xf32, #tpu.memory_space<vmem>>, vector<8x1xf32>
    tpu.vector_store %arg15[%c0_37, %c0_38], %44 {strides = array<i32>} : memref<8x1xf32, #tpu.memory_space<vmem>>, vector<8x1xf32>,
    %cst_39 = arith.constant 0.000000e+00 : f32
    %46 = vector.broadcast %cst_39 : f32 to vector<8x1xf32>
    %c0_40 = arith.constant 0 : index
    %c0_41 = arith.constant 0 : index
    %47 = vector.load %arg16[%c0_40, %c0_41] : memref<8x1xf32, #tpu.memory_space<vmem>>, vector<8x1xf32>
    tpu.vector_store %arg16[%c0_40, %c0_41], %46 {strides = array<i32>} : memref<8x1xf32, #tpu.memory_space<vmem>>, vector<8x1xf32>,
    %cst_42 = arith.constant 0.000000e+00 : f32
    %48 = vector.broadcast %cst_42 : f32 to vector<8x8xf32>
    %c0_43 = arith.constant 0 : index
    %c0_44 = arith.constant 0 : index
    %49 = vector.load %arg17[%c0_43, %c0_44] : memref<8x8xf32, #tpu.memory_space<vmem>>, vector<8x8xf32>
    tpu.vector_store %arg17[%c0_43, %c0_44], %48 {strides = array<i32>} : memref<8x8xf32, #tpu.memory_space<vmem>>, vector<8x8xf32>,
    %c0_i32_45 = arith.constant 0 : i32
    %50 = arith.subi %22, %c0_i32_45 : i32
    %c1_i32_46 = arith.constant 1 : i32
    %c1_i32_47 = arith.constant 1 : i32
    %51 = arith.subi %c1_i32_46, %c1_i32_47 : i32
    %52 = arith.addi %50, %51 : i32
    %c1_i32_48 = arith.constant 1 : i32
    %53 = arith.divsi %52, %c1_i32_48 : i32
    %c1_i32_49 = arith.constant 1 : i32
    %c0_i32_50 = arith.constant 0 : i32
    %c1_i32_51 = arith.constant 1 : i32
    %c1_i32_52 = arith.constant 1 : i32
    %cst_53 = arith.constant -1.000000e+30 : f32
    %c0_i32_54 = arith.constant 0 : i32
    %54 = arith.subi %53, %c0_i32_54 : i32
    %55 = arith.addi %c0_i32_54, %54 : i32
    %c1_i32_55 = arith.constant 1 : i32
    scf.for %arg18 = %c0_i32_54 to %55 step %c1_i32_55  : i32 {
      %112 = arith.muli %arg18, %c1_i32_49 : i32
      %113 = arith.addi %c0_i32_50, %112 : i32
      %c8_i32_119 = arith.constant 8 : i32
      %114 = arith.muli %113, %c8_i32_119 : i32
      %115 = tpu.assume_multiple %114, 8 : i32
      %c0_i32_120 = arith.constant 0 : i32
      %c0_i32_121 = arith.constant 0 : i32
      %116 = tpu.memref_slice %arg12[%c1_i32_51, %c0_i32_120, %c0_i32_121] : memref<4x8x8xbf16, #tpu.memory_space<vmem>> -> memref<1x8x8xbf16, #tpu.memory_space<vmem>>
      %117 = tpu.memref_squeeze %116 : memref<1x8x8xbf16, #tpu.memory_space<vmem>> -> memref<8x8xbf16, #tpu.memory_space<vmem>>
      %118 = arith.index_cast %115 : i32 to index
      %c0_122 = arith.constant 0 : index
      %119 = vector.load %117[%118, %c0_122] : memref<8x8xbf16, #tpu.memory_space<vmem>>, vector<8x8xbf16>
      %c0_i32_123 = arith.constant 0 : i32
      %c0_i32_124 = arith.constant 0 : i32
      %120 = tpu.memref_slice %arg13[%c1_i32_52, %c0_i32_123, %c0_i32_124] : memref<4x8x8xbf16, #tpu.memory_space<vmem>> -> memref<1x8x8xbf16, #tpu.memory_space<vmem>>
      %121 = tpu.memref_squeeze %120 : memref<1x8x8xbf16, #tpu.memory_space<vmem>> -> memref<8x8xbf16, #tpu.memory_space<vmem>>
      %122 = arith.index_cast %115 : i32 to index
      %c0_125 = arith.constant 0 : index
      %123 = vector.load %121[%122, %c0_125] : memref<8x8xbf16, #tpu.memory_space<vmem>>, vector<8x8xbf16>
      %cst_126 = arith.constant dense<0.000000e+00> : vector<8x8xf32>
      %124 = tpu.matmul %43, %119, %cst_126 {dimension_numbers = #tpu.dot_dimension_numbers<[1], [1], [0], [0], [0, 0, 1, 0], [], []>} : vector<8x8xbf16>, vector<8x8xbf16>, vector<8x8xf32> -> vector<8x8xf32>
      %c8_i32_127 = arith.constant 8 : i32
      %125 = arith.muli %113, %c8_i32_127 : i32
      %126 = vector.broadcast %125 : i32 to vector<8x8xi32>
      %127 = arith.addi %21, %126 : vector<8x8xi32>
      %128 = arith.cmpi sle, %127, %20 : vector<8x8xi32>
      %129 = vector.broadcast %cst_53 : f32 to vector<8x8xf32>
      %130 = arith.select %128, %124, %129 : vector<8x8xi1>, vector<8x8xf32>
      %c0_128 = arith.constant 0 : index
      %c0_129 = arith.constant 0 : index
      %131 = vector.load %arg15[%c0_128, %c0_129] : memref<8x1xf32, #tpu.memory_space<vmem>>, vector<8x1xf32>
      %cst_130 = arith.constant dense<0xFF800000> : vector<8xf32>
      %132 = vector.multi_reduction <maximumf>, %130, %cst_130 [1] : vector<8x8xf32> to vector<8xf32>
      %133 = vector.shape_cast %132 : vector<8xf32> to vector<8x1xf32>
      %134 = arith.maximumf %131, %133 : vector<8x1xf32>
      %135 = arith.subf %131, %134 : vector<8x1xf32>
      %136 = math.exp %135 : vector<8x1xf32>
      %137 = vector.broadcast %134 : vector<8x1xf32> to vector<8x8xf32>
      %138 = arith.subf %130, %137 : vector<8x8xf32>
      %139 = math.exp %138 : vector<8x8xf32>
      %c0_131 = arith.constant 0 : index
      %c0_132 = arith.constant 0 : index
      %140 = vector.load %arg16[%c0_131, %c0_132] : memref<8x1xf32, #tpu.memory_space<vmem>>, vector<8x1xf32>
      %141 = arith.mulf %136, %140 : vector<8x1xf32>
      %cst_133 = arith.constant dense<0.000000e+00> : vector<8xf32>
      %142 = vector.multi_reduction <add>, %139, %cst_133 [1] : vector<8x8xf32> to vector<8xf32>
      %143 = vector.shape_cast %142 : vector<8xf32> to vector<8x1xf32>
      %144 = arith.addf %141, %143 : vector<8x1xf32>
      %c0_134 = arith.constant 0 : index
      %c0_135 = arith.constant 0 : index
      %145 = vector.load %arg16[%c0_134, %c0_135] : memref<8x1xf32, #tpu.memory_space<vmem>>, vector<8x1xf32>
      tpu.vector_store %arg16[%c0_134, %c0_135], %144 {strides = array<i32>} : memref<8x1xf32, #tpu.memory_space<vmem>>, vector<8x1xf32>,
      %c0_136 = arith.constant 0 : index
      %c0_137 = arith.constant 0 : index
      %146 = vector.load %arg17[%c0_136, %c0_137] : memref<8x8xf32, #tpu.memory_space<vmem>>, vector<8x8xf32>
      %147 = vector.broadcast %136 : vector<8x1xf32> to vector<8x8xf32>
      %148 = arith.mulf %147, %146 : vector<8x8xf32>
      %149 = arith.truncf %139 : vector<8x8xf32> to vector<8x8xbf16>
      %cst_138 = arith.constant dense<0.000000e+00> : vector<8x8xf32>
      %150 = tpu.matmul %149, %123, %cst_138 {dimension_numbers = #tpu.dot_dimension_numbers<[1], [0], [0], [1], [0, 0, 1, 1], [], []>} : vector<8x8xbf16>, vector<8x8xbf16>, vector<8x8xf32> -> vector<8x8xf32>
      %151 = arith.addf %148, %150 : vector<8x8xf32>
      %c0_139 = arith.constant 0 : index
      %c0_140 = arith.constant 0 : index
      %152 = vector.load %arg17[%c0_139, %c0_140] : memref<8x8xf32, #tpu.memory_space<vmem>>, vector<8x8xf32>
      tpu.vector_store %arg17[%c0_139, %c0_140], %151 {strides = array<i32>} : memref<8x8xf32, #tpu.memory_space<vmem>>, vector<8x8xf32>,
      %c0_141 = arith.constant 0 : index
      %c0_142 = arith.constant 0 : index
      %153 = vector.load %arg15[%c0_141, %c0_142] : memref<8x1xf32, #tpu.memory_space<vmem>>, vector<8x1xf32>
      tpu.vector_store %arg15[%c0_141, %c0_142], %134 {strides = array<i32>} : memref<8x1xf32, #tpu.memory_space<vmem>>, vector<8x1xf32>,
    }
    %c0_56 = arith.constant 0 : index
    %c0_57 = arith.constant 0 : index
    %56 = vector.load %arg17[%c0_56, %c0_57] : memref<8x8xf32, #tpu.memory_space<vmem>>, vector<8x8xf32>
    %c0_58 = arith.constant 0 : index
    %c0_59 = arith.constant 0 : index
    %57 = vector.load %arg16[%c0_58, %c0_59] : memref<8x1xf32, #tpu.memory_space<vmem>>, vector<8x1xf32>
    %58 = tpu.reciprocal %57 {approx = true} : vector<8x1xf32> -> vector<8x1xf32>
    %59 = vector.broadcast %58 : vector<8x1xf32> to vector<8x8xf32>
    %60 = arith.mulf %56, %59 : vector<8x8xf32>
    %61 = arith.truncf %60 : vector<8x8xf32> to vector<8x8xbf16>
    %c0_60 = arith.constant 0 : index
    %c8 = arith.constant 8 : index
    %62 = vector.load %arg14[%c0_60, %c8] : memref<8x32xbf16, #tpu.memory_space<vmem>>, vector<8x8xbf16>
    tpu.vector_store %arg14[%c0_60, %c8], %61 {strides = array<i32>} : memref<8x32xbf16, #tpu.memory_space<vmem>>, vector<8x8xbf16>,
    %63 = vector.extract_strided_slice %16 {offsets = [0, 16], sizes = [8, 8], strides = [1, 1]} : vector<8x32xbf16> to vector<8x8xbf16>
    %cst_61 = arith.constant -1.000000e+30 : f32
    %64 = vector.broadcast %cst_61 : f32 to vector<8x1xf32>
    %c0_62 = arith.constant 0 : index
    %c0_63 = arith.constant 0 : index
    %65 = vector.load %arg15[%c0_62, %c0_63] : memref<8x1xf32, #tpu.memory_space<vmem>>, vector<8x1xf32>
    tpu.vector_store %arg15[%c0_62, %c0_63], %64 {strides = array<i32>} : memref<8x1xf32, #tpu.memory_space<vmem>>, vector<8x1xf32>,
    %cst_64 = arith.constant 0.000000e+00 : f32
    %66 = vector.broadcast %cst_64 : f32 to vector<8x1xf32>
    %c0_65 = arith.constant 0 : index
    %c0_66 = arith.constant 0 : index
    %67 = vector.load %arg16[%c0_65, %c0_66] : memref<8x1xf32, #tpu.memory_space<vmem>>, vector<8x1xf32>
    tpu.vector_store %arg16[%c0_65, %c0_66], %66 {strides = array<i32>} : memref<8x1xf32, #tpu.memory_space<vmem>>, vector<8x1xf32>,
    %cst_67 = arith.constant 0.000000e+00 : f32
    %68 = vector.broadcast %cst_67 : f32 to vector<8x8xf32>
    %c0_68 = arith.constant 0 : index
    %c0_69 = arith.constant 0 : index
    %69 = vector.load %arg17[%c0_68, %c0_69] : memref<8x8xf32, #tpu.memory_space<vmem>>, vector<8x8xf32>
    tpu.vector_store %arg17[%c0_68, %c0_69], %68 {strides = array<i32>} : memref<8x8xf32, #tpu.memory_space<vmem>>, vector<8x8xf32>,
    %c0_i32_70 = arith.constant 0 : i32
    %70 = arith.subi %22, %c0_i32_70 : i32
    %c1_i32_71 = arith.constant 1 : i32
    %c1_i32_72 = arith.constant 1 : i32
    %71 = arith.subi %c1_i32_71, %c1_i32_72 : i32
    %72 = arith.addi %70, %71 : i32
    %c1_i32_73 = arith.constant 1 : i32
    %73 = arith.divsi %72, %c1_i32_73 : i32
    %c1_i32_74 = arith.constant 1 : i32
    %c0_i32_75 = arith.constant 0 : i32
    %c2_i32 = arith.constant 2 : i32
    %c2_i32_76 = arith.constant 2 : i32
    %cst_77 = arith.constant -1.000000e+30 : f32
    %c0_i32_78 = arith.constant 0 : i32
    %74 = arith.subi %73, %c0_i32_78 : i32
    %75 = arith.addi %c0_i32_78, %74 : i32
    %c1_i32_79 = arith.constant 1 : i32
    scf.for %arg18 = %c0_i32_78 to %75 step %c1_i32_79  : i32 {
      %112 = arith.muli %arg18, %c1_i32_74 : i32
      %113 = arith.addi %c0_i32_75, %112 : i32
      %c8_i32_119 = arith.constant 8 : i32
      %114 = arith.muli %113, %c8_i32_119 : i32
      %115 = tpu.assume_multiple %114, 8 : i32
      %c0_i32_120 = arith.constant 0 : i32
      %c0_i32_121 = arith.constant 0 : i32
      %116 = tpu.memref_slice %arg12[%c2_i32, %c0_i32_120, %c0_i32_121] : memref<4x8x8xbf16, #tpu.memory_space<vmem>> -> memref<1x8x8xbf16, #tpu.memory_space<vmem>>
      %117 = tpu.memref_squeeze %116 : memref<1x8x8xbf16, #tpu.memory_space<vmem>> -> memref<8x8xbf16, #tpu.memory_space<vmem>>
      %118 = arith.index_cast %115 : i32 to index
      %c0_122 = arith.constant 0 : index
      %119 = vector.load %117[%118, %c0_122] : memref<8x8xbf16, #tpu.memory_space<vmem>>, vector<8x8xbf16>
      %c0_i32_123 = arith.constant 0 : i32
      %c0_i32_124 = arith.constant 0 : i32
      %120 = tpu.memref_slice %arg13[%c2_i32_76, %c0_i32_123, %c0_i32_124] : memref<4x8x8xbf16, #tpu.memory_space<vmem>> -> memref<1x8x8xbf16, #tpu.memory_space<vmem>>
      %121 = tpu.memref_squeeze %120 : memref<1x8x8xbf16, #tpu.memory_space<vmem>> -> memref<8x8xbf16, #tpu.memory_space<vmem>>
      %122 = arith.index_cast %115 : i32 to index
      %c0_125 = arith.constant 0 : index
      %123 = vector.load %121[%122, %c0_125] : memref<8x8xbf16, #tpu.memory_space<vmem>>, vector<8x8xbf16>
      %cst_126 = arith.constant dense<0.000000e+00> : vector<8x8xf32>
      %124 = tpu.matmul %63, %119, %cst_126 {dimension_numbers = #tpu.dot_dimension_numbers<[1], [1], [0], [0], [0, 0, 1, 0], [], []>} : vector<8x8xbf16>, vector<8x8xbf16>, vector<8x8xf32> -> vector<8x8xf32>
      %c8_i32_127 = arith.constant 8 : i32
      %125 = arith.muli %113, %c8_i32_127 : i32
      %126 = vector.broadcast %125 : i32 to vector<8x8xi32>
      %127 = arith.addi %21, %126 : vector<8x8xi32>
      %128 = arith.cmpi sle, %127, %20 : vector<8x8xi32>
      %129 = vector.broadcast %cst_77 : f32 to vector<8x8xf32>
      %130 = arith.select %128, %124, %129 : vector<8x8xi1>, vector<8x8xf32>
      %c0_128 = arith.constant 0 : index
      %c0_129 = arith.constant 0 : index
      %131 = vector.load %arg15[%c0_128, %c0_129] : memref<8x1xf32, #tpu.memory_space<vmem>>, vector<8x1xf32>
      %cst_130 = arith.constant dense<0xFF800000> : vector<8xf32>
      %132 = vector.multi_reduction <maximumf>, %130, %cst_130 [1] : vector<8x8xf32> to vector<8xf32>
      %133 = vector.shape_cast %132 : vector<8xf32> to vector<8x1xf32>
      %134 = arith.maximumf %131, %133 : vector<8x1xf32>
      %135 = arith.subf %131, %134 : vector<8x1xf32>
      %136 = math.exp %135 : vector<8x1xf32>
      %137 = vector.broadcast %134 : vector<8x1xf32> to vector<8x8xf32>
      %138 = arith.subf %130, %137 : vector<8x8xf32>
      %139 = math.exp %138 : vector<8x8xf32>
      %c0_131 = arith.constant 0 : index
      %c0_132 = arith.constant 0 : index
      %140 = vector.load %arg16[%c0_131, %c0_132] : memref<8x1xf32, #tpu.memory_space<vmem>>, vector<8x1xf32>
      %141 = arith.mulf %136, %140 : vector<8x1xf32>
      %cst_133 = arith.constant dense<0.000000e+00> : vector<8xf32>
      %142 = vector.multi_reduction <add>, %139, %cst_133 [1] : vector<8x8xf32> to vector<8xf32>
      %143 = vector.shape_cast %142 : vector<8xf32> to vector<8x1xf32>
      %144 = arith.addf %141, %143 : vector<8x1xf32>
      %c0_134 = arith.constant 0 : index
      %c0_135 = arith.constant 0 : index
      %145 = vector.load %arg16[%c0_134, %c0_135] : memref<8x1xf32, #tpu.memory_space<vmem>>, vector<8x1xf32>
      tpu.vector_store %arg16[%c0_134, %c0_135], %144 {strides = array<i32>} : memref<8x1xf32, #tpu.memory_space<vmem>>, vector<8x1xf32>,
      %c0_136 = arith.constant 0 : index
      %c0_137 = arith.constant 0 : index
      %146 = vector.load %arg17[%c0_136, %c0_137] : memref<8x8xf32, #tpu.memory_space<vmem>>, vector<8x8xf32>
      %147 = vector.broadcast %136 : vector<8x1xf32> to vector<8x8xf32>
      %148 = arith.mulf %147, %146 : vector<8x8xf32>
      %149 = arith.truncf %139 : vector<8x8xf32> to vector<8x8xbf16>
      %cst_138 = arith.constant dense<0.000000e+00> : vector<8x8xf32>
      %150 = tpu.matmul %149, %123, %cst_138 {dimension_numbers = #tpu.dot_dimension_numbers<[1], [0], [0], [1], [0, 0, 1, 1], [], []>} : vector<8x8xbf16>, vector<8x8xbf16>, vector<8x8xf32> -> vector<8x8xf32>
      %151 = arith.addf %148, %150 : vector<8x8xf32>
      %c0_139 = arith.constant 0 : index
      %c0_140 = arith.constant 0 : index
      %152 = vector.load %arg17[%c0_139, %c0_140] : memref<8x8xf32, #tpu.memory_space<vmem>>, vector<8x8xf32>
      tpu.vector_store %arg17[%c0_139, %c0_140], %151 {strides = array<i32>} : memref<8x8xf32, #tpu.memory_space<vmem>>, vector<8x8xf32>,
      %c0_141 = arith.constant 0 : index
      %c0_142 = arith.constant 0 : index
      %153 = vector.load %arg15[%c0_141, %c0_142] : memref<8x1xf32, #tpu.memory_space<vmem>>, vector<8x1xf32>
      tpu.vector_store %arg15[%c0_141, %c0_142], %134 {strides = array<i32>} : memref<8x1xf32, #tpu.memory_space<vmem>>, vector<8x1xf32>,
    }
    %c0_80 = arith.constant 0 : index
    %c0_81 = arith.constant 0 : index
    %76 = vector.load %arg17[%c0_80, %c0_81] : memref<8x8xf32, #tpu.memory_space<vmem>>, vector<8x8xf32>
    %c0_82 = arith.constant 0 : index
    %c0_83 = arith.constant 0 : index
    %77 = vector.load %arg16[%c0_82, %c0_83] : memref<8x1xf32, #tpu.memory_space<vmem>>, vector<8x1xf32>
    %78 = tpu.reciprocal %77 {approx = true} : vector<8x1xf32> -> vector<8x1xf32>
    %79 = vector.broadcast %78 : vector<8x1xf32> to vector<8x8xf32>
    %80 = arith.mulf %76, %79 : vector<8x8xf32>
    %81 = arith.truncf %80 : vector<8x8xf32> to vector<8x8xbf16>
    %c0_84 = arith.constant 0 : index
    %c16 = arith.constant 16 : index
    %82 = vector.load %arg14[%c0_84, %c16] : memref<8x32xbf16, #tpu.memory_space<vmem>>, vector<8x8xbf16>
    tpu.vector_store %arg14[%c0_84, %c16], %81 {strides = array<i32>} : memref<8x32xbf16, #tpu.memory_space<vmem>>, vector<8x8xbf16>,
    %83 = vector.extract_strided_slice %16 {offsets = [0, 24], sizes = [8, 8], strides = [1, 1]} : vector<8x32xbf16> to vector<8x8xbf16>
    %cst_85 = arith.constant -1.000000e+30 : f32
    %84 = vector.broadcast %cst_85 : f32 to vector<8x1xf32>
    %c0_86 = arith.constant 0 : index
    %c0_87 = arith.constant 0 : index
    %85 = vector.load %arg15[%c0_86, %c0_87] : memref<8x1xf32, #tpu.memory_space<vmem>>, vector<8x1xf32>
    tpu.vector_store %arg15[%c0_86, %c0_87], %84 {strides = array<i32>} : memref<8x1xf32, #tpu.memory_space<vmem>>, vector<8x1xf32>,
    %cst_88 = arith.constant 0.000000e+00 : f32
    %86 = vector.broadcast %cst_88 : f32 to vector<8x1xf32>
    %c0_89 = arith.constant 0 : index
    %c0_90 = arith.constant 0 : index
    %87 = vector.load %arg16[%c0_89, %c0_90] : memref<8x1xf32, #tpu.memory_space<vmem>>, vector<8x1xf32>
    tpu.vector_store %arg16[%c0_89, %c0_90], %86 {strides = array<i32>} : memref<8x1xf32, #tpu.memory_space<vmem>>, vector<8x1xf32>,
    %cst_91 = arith.constant 0.000000e+00 : f32
    %88 = vector.broadcast %cst_91 : f32 to vector<8x8xf32>
    %c0_92 = arith.constant 0 : index
    %c0_93 = arith.constant 0 : index
    %89 = vector.load %arg17[%c0_92, %c0_93] : memref<8x8xf32, #tpu.memory_space<vmem>>, vector<8x8xf32>
    tpu.vector_store %arg17[%c0_92, %c0_93], %88 {strides = array<i32>} : memref<8x8xf32, #tpu.memory_space<vmem>>, vector<8x8xf32>,
    %c0_i32_94 = arith.constant 0 : i32
    %90 = arith.subi %22, %c0_i32_94 : i32
    %c1_i32_95 = arith.constant 1 : i32
    %c1_i32_96 = arith.constant 1 : i32
    %91 = arith.subi %c1_i32_95, %c1_i32_96 : i32
    %92 = arith.addi %90, %91 : i32
    %c1_i32_97 = arith.constant 1 : i32
    %93 = arith.divsi %92, %c1_i32_97 : i32
    %c1_i32_98 = arith.constant 1 : i32
    %c0_i32_99 = arith.constant 0 : i32
    %c3_i32 = arith.constant 3 : i32
    %c3_i32_100 = arith.constant 3 : i32
    %cst_101 = arith.constant -1.000000e+30 : f32
    %c0_i32_102 = arith.constant 0 : i32
    %94 = arith.subi %93, %c0_i32_102 : i32
    %95 = arith.addi %c0_i32_102, %94 : i32
    %c1_i32_103 = arith.constant 1 : i32
    scf.for %arg18 = %c0_i32_102 to %95 step %c1_i32_103  : i32 {
      %112 = arith.muli %arg18, %c1_i32_98 : i32
      %113 = arith.addi %c0_i32_99, %112 : i32
      %c8_i32_119 = arith.constant 8 : i32
      %114 = arith.muli %113, %c8_i32_119 : i32
      %115 = tpu.assume_multiple %114, 8 : i32
      %c0_i32_120 = arith.constant 0 : i32
      %c0_i32_121 = arith.constant 0 : i32
      %116 = tpu.memref_slice %arg12[%c3_i32, %c0_i32_120, %c0_i32_121] : memref<4x8x8xbf16, #tpu.memory_space<vmem>> -> memref<1x8x8xbf16, #tpu.memory_space<vmem>>
      %117 = tpu.memref_squeeze %116 : memref<1x8x8xbf16, #tpu.memory_space<vmem>> -> memref<8x8xbf16, #tpu.memory_space<vmem>>
      %118 = arith.index_cast %115 : i32 to index
      %c0_122 = arith.constant 0 : index
      %119 = vector.load %117[%118, %c0_122] : memref<8x8xbf16, #tpu.memory_space<vmem>>, vector<8x8xbf16>
      %c0_i32_123 = arith.constant 0 : i32
      %c0_i32_124 = arith.constant 0 : i32
      %120 = tpu.memref_slice %arg13[%c3_i32_100, %c0_i32_123, %c0_i32_124] : memref<4x8x8xbf16, #tpu.memory_space<vmem>> -> memref<1x8x8xbf16, #tpu.memory_space<vmem>>
      %121 = tpu.memref_squeeze %120 : memref<1x8x8xbf16, #tpu.memory_space<vmem>> -> memref<8x8xbf16, #tpu.memory_space<vmem>>
      %122 = arith.index_cast %115 : i32 to index
      %c0_125 = arith.constant 0 : index
      %123 = vector.load %121[%122, %c0_125] : memref<8x8xbf16, #tpu.memory_space<vmem>>, vector<8x8xbf16>
      %cst_126 = arith.constant dense<0.000000e+00> : vector<8x8xf32>
      %124 = tpu.matmul %83, %119, %cst_126 {dimension_numbers = #tpu.dot_dimension_numbers<[1], [1], [0], [0], [0, 0, 1, 0], [], []>} : vector<8x8xbf16>, vector<8x8xbf16>, vector<8x8xf32> -> vector<8x8xf32>
      %c8_i32_127 = arith.constant 8 : i32
      %125 = arith.muli %113, %c8_i32_127 : i32
      %126 = vector.broadcast %125 : i32 to vector<8x8xi32>
      %127 = arith.addi %21, %126 : vector<8x8xi32>
      %128 = arith.cmpi sle, %127, %20 : vector<8x8xi32>
      %129 = vector.broadcast %cst_101 : f32 to vector<8x8xf32>
      %130 = arith.select %128, %124, %129 : vector<8x8xi1>, vector<8x8xf32>
      %c0_128 = arith.constant 0 : index
      %c0_129 = arith.constant 0 : index
      %131 = vector.load %arg15[%c0_128, %c0_129] : memref<8x1xf32, #tpu.memory_space<vmem>>, vector<8x1xf32>
      %cst_130 = arith.constant dense<0xFF800000> : vector<8xf32>
      %132 = vector.multi_reduction <maximumf>, %130, %cst_130 [1] : vector<8x8xf32> to vector<8xf32>
      %133 = vector.shape_cast %132 : vector<8xf32> to vector<8x1xf32>
      %134 = arith.maximumf %131, %133 : vector<8x1xf32>
      %135 = arith.subf %131, %134 : vector<8x1xf32>
      %136 = math.exp %135 : vector<8x1xf32>
      %137 = vector.broadcast %134 : vector<8x1xf32> to vector<8x8xf32>
      %138 = arith.subf %130, %137 : vector<8x8xf32>
      %139 = math.exp %138 : vector<8x8xf32>
      %c0_131 = arith.constant 0 : index
      %c0_132 = arith.constant 0 : index
      %140 = vector.load %arg16[%c0_131, %c0_132] : memref<8x1xf32, #tpu.memory_space<vmem>>, vector<8x1xf32>
      %141 = arith.mulf %136, %140 : vector<8x1xf32>
      %cst_133 = arith.constant dense<0.000000e+00> : vector<8xf32>
      %142 = vector.multi_reduction <add>, %139, %cst_133 [1] : vector<8x8xf32> to vector<8xf32>
      %143 = vector.shape_cast %142 : vector<8xf32> to vector<8x1xf32>
      %144 = arith.addf %141, %143 : vector<8x1xf32>
      %c0_134 = arith.constant 0 : index
      %c0_135 = arith.constant 0 : index
      %145 = vector.load %arg16[%c0_134, %c0_135] : memref<8x1xf32, #tpu.memory_space<vmem>>, vector<8x1xf32>
      tpu.vector_store %arg16[%c0_134, %c0_135], %144 {strides = array<i32>} : memref<8x1xf32, #tpu.memory_space<vmem>>, vector<8x1xf32>,
      %c0_136 = arith.constant 0 : index
      %c0_137 = arith.constant 0 : index
      %146 = vector.load %arg17[%c0_136, %c0_137] : memref<8x8xf32, #tpu.memory_space<vmem>>, vector<8x8xf32>
      %147 = vector.broadcast %136 : vector<8x1xf32> to vector<8x8xf32>
      %148 = arith.mulf %147, %146 : vector<8x8xf32>
      %149 = arith.truncf %139 : vector<8x8xf32> to vector<8x8xbf16>
      %cst_138 = arith.constant dense<0.000000e+00> : vector<8x8xf32>
      %150 = tpu.matmul %149, %123, %cst_138 {dimension_numbers = #tpu.dot_dimension_numbers<[1], [0], [0], [1], [0, 0, 1, 1], [], []>} : vector<8x8xbf16>, vector<8x8xbf16>, vector<8x8xf32> -> vector<8x8xf32>
      %151 = arith.addf %148, %150 : vector<8x8xf32>
      %c0_139 = arith.constant 0 : index
      %c0_140 = arith.constant 0 : index
      %152 = vector.load %arg17[%c0_139, %c0_140] : memref<8x8xf32, #tpu.memory_space<vmem>>, vector<8x8xf32>
      tpu.vector_store %arg17[%c0_139, %c0_140], %151 {strides = array<i32>} : memref<8x8xf32, #tpu.memory_space<vmem>>, vector<8x8xf32>,
      %c0_141 = arith.constant 0 : index
      %c0_142 = arith.constant 0 : index
      %153 = vector.load %arg15[%c0_141, %c0_142] : memref<8x1xf32, #tpu.memory_space<vmem>>, vector<8x1xf32>
      tpu.vector_store %arg15[%c0_141, %c0_142], %134 {strides = array<i32>} : memref<8x1xf32, #tpu.memory_space<vmem>>, vector<8x1xf32>,
    }
    %c0_104 = arith.constant 0 : index
    %c0_105 = arith.constant 0 : index
    %96 = vector.load %arg17[%c0_104, %c0_105] : memref<8x8xf32, #tpu.memory_space<vmem>>, vector<8x8xf32>
    %c0_106 = arith.constant 0 : index
    %c0_107 = arith.constant 0 : index
    %97 = vector.load %arg16[%c0_106, %c0_107] : memref<8x1xf32, #tpu.memory_space<vmem>>, vector<8x1xf32>
    %98 = tpu.reciprocal %97 {approx = true} : vector<8x1xf32> -> vector<8x1xf32>
    %99 = vector.broadcast %98 : vector<8x1xf32> to vector<8x8xf32>
    %100 = arith.mulf %96, %99 : vector<8x8xf32>
    %101 = arith.truncf %100 : vector<8x8xf32> to vector<8x8xbf16>
    %c0_108 = arith.constant 0 : index
    %c24 = arith.constant 24 : index
    %102 = vector.load %arg14[%c0_108, %c24] : memref<8x32xbf16, #tpu.memory_space<vmem>>, vector<8x8xbf16>
    tpu.vector_store %arg14[%c0_108, %c24], %101 {strides = array<i32>} : memref<8x32xbf16, #tpu.memory_space<vmem>>, vector<8x8xbf16>,
    %c0_109 = arith.constant 0 : index
    %c0_110 = arith.constant 0 : index
    %103 = vector.load %arg14[%c0_109, %c0_110] : memref<8x32xbf16, #tpu.memory_space<vmem>>, vector<8x32xbf16>
    %c0_111 = arith.constant 0 : index
    %c0_112 = arith.constant 0 : index
    %104 = vector.load %arg6[%c0_111, %c0_112] : memref<32x32xbf16, #tpu.memory_space<vmem>>, vector<32x32xbf16>
    %cst_113 = arith.constant dense<0.000000e+00> : vector<8x32xf32>
    %105 = tpu.matmul %103, %104, %cst_113 {dimension_numbers = #tpu.dot_dimension_numbers<[1], [0], [0], [1], [0, 0, 1, 1], [], []>} : vector<8x32xbf16>, vector<32x32xbf16>, vector<8x32xf32> -> vector<8x32xf32>
    %c0_114 = arith.constant 0 : index
    %c0_115 = arith.constant 0 : index
    %106 = vector.load %arg10[%c0_114, %c0_115] : memref<1x32xf32, #tpu.memory_space<vmem>>, vector<1x32xf32>
    %107 = vector.broadcast %106 : vector<1x32xf32> to vector<8x32xf32>
    %108 = arith.addf %105, %107 : vector<8x32xf32>
    %c0_116 = arith.constant 0 : index
    %c0_117 = arith.constant 0 : index
    %c0_118 = arith.constant 0 : index
    %109 = vector.load %arg11[%c0_116, %c0_117, %c0_118] : memref<1x8x32xf32, #tpu.memory_space<vmem>>, vector<1x8x32xf32>
    %110 = vector.shape_cast %109 : vector<1x8x32xf32> to vector<8x32xf32>
    %111 = vector.shape_cast %108 : vector<8x32xf32> to vector<1x8x32xf32>
    tpu.vector_store %arg11[%c0_116, %c0_117, %c0_118], %111 {strides = array<i32>} : memref<1x8x32xf32, #tpu.memory_space<vmem>>, vector<1x8x32xf32>,
    return
  }
  func.func @transform_0(%arg0: i32, %arg1: i32) -> (i32, i32, i32) {
    %c0_i32 = arith.constant 0 : i32
    %c0_i32_0 = arith.constant 0 : i32
    %c0_i32_1 = arith.constant 0 : i32
    return %arg0, %c0_i32, %c0_i32_0 : i32, i32, i32
  }
  func.func @transform_1(%arg0: i32, %arg1: i32) -> (i32, i32) {
    %c0_i32 = arith.constant 0 : i32
    %c0_i32_0 = arith.constant 0 : i32
    %c0_i32_1 = arith.constant 0 : i32
    return %c0_i32, %c0_i32_0 : i32, i32
  }
  func.func @transform_2(%arg0: i32, %arg1: i32) -> (i32, i32) {
    %c0_i32 = arith.constant 0 : i32
    %c0_i32_0 = arith.constant 0 : i32
    %c0_i32_1 = arith.constant 0 : i32
    return %c0_i32, %c0_i32_0 : i32, i32
  }
  func.func @transform_3(%arg0: i32, %arg1: i32) -> (i32, i32) {
    %c0_i32 = arith.constant 0 : i32
    %c0_i32_0 = arith.constant 0 : i32
    %c0_i32_1 = arith.constant 0 : i32
    return %c0_i32, %c0_i32_0 : i32, i32
  }
  func.func @transform_4(%arg0: i32, %arg1: i32) -> (i32, i32) {
    %c0_i32 = arith.constant 0 : i32
    %c0_i32_0 = arith.constant 0 : i32
    %c0_i32_1 = arith.constant 0 : i32
    return %c0_i32, %c0_i32_0 : i32, i32
  }
  func.func @transform_5(%arg0: i32, %arg1: i32) -> (i32, i32) {
    %c0_i32 = arith.constant 0 : i32
    %c0_i32_0 = arith.constant 0 : i32
    %c0_i32_1 = arith.constant 0 : i32
    return %c0_i32, %c0_i32_0 : i32, i32
  }
  func.func @transform_6(%arg0: i32, %arg1: i32) -> (i32, i32) {
    %c0_i32 = arith.constant 0 : i32
    %c0_i32_0 = arith.constant 0 : i32
    %c0_i32_1 = arith.constant 0 : i32
    return %c0_i32, %c0_i32_0 : i32, i32
  }
  func.func @transform_7(%arg0: i32, %arg1: i32) -> (i32, i32) {
    %c0_i32 = arith.constant 0 : i32
    %c0_i32_0 = arith.constant 0 : i32
    %c0_i32_1 = arith.constant 0 : i32
    return %c0_i32, %c0_i32_0 : i32, i32
  }
  func.func @transform_8(%arg0: i32, %arg1: i32) -> (i32, i32) {
    %c0_i32 = arith.constant 0 : i32
    %c0_i32_0 = arith.constant 0 : i32
    %c0_i32_1 = arith.constant 0 : i32
    return %c0_i32, %c0_i32_0 : i32, i32
  }
  func.func @transform_9(%arg0: i32, %arg1: i32) -> (i32, i32, i32) {
    %c0_i32 = arith.constant 0 : i32
    %c0_i32_0 = arith.constant 0 : i32
    return %arg0, %arg1, %c0_i32 : i32, i32, i32
  }
}

</mosaic_0001>

<llo_original>
// kernel: tpu_custom_call.1
$region0: #{tpu_custom_call.1}
  #allocation0 [shape = 'u32[]', space=smem, size = 0x4, offset = 0x4, fixed_abs, tag = 'smem constant byte address 0x4 - core index']
  #allocation1 [shape = 'u32[144,128]{1,0:T(1,128)}', space=vmem, size = 0x12000, scoped, tag = 'internal scratch']
  #allocation2 [shape = 'bf16[4,8,8]{2,1,0:T(8,128)(2,1)}', space=vmem, size = 0x2000, scoped, tag = 'scratch operand']
  #allocation3 [shape = 'bf16[4,8,8]{2,1,0:T(8,128)(2,1)}', space=vmem, size = 0x2000, scoped, tag = 'scratch operand']
  #allocation4 [shape = 'bf16[8,32]{1,0:T(8,128)(2,1)}', space=vmem, size = 0x800, scoped, tag = 'scratch operand']
  #allocation5 [shape = 'f32[8,1]{1,0:T(8,128)}', space=vmem, size = 0x1000, scoped, tag = 'scratch operand']
  #allocation6 [shape = 'f32[8,1]{1,0:T(8,128)}', space=vmem, size = 0x1000, scoped, tag = 'scratch operand']
  #allocation7 [shape = 'f32[8,8]{1,0:T(8,128)}', space=vmem, size = 0x1000, scoped, tag = 'scratch operand']
  %s0 = inlined_call_operand.hbm [shape: bf16[2,8,32], index: 0, kind: input, shape index: {}]
  %s1 = inlined_call_operand.hbm [shape: bf16[32,32], index: 1, kind: input, shape index: {}]
  %s2 = inlined_call_operand.hbm [shape: bf16[32,32], index: 2, kind: input, shape index: {}]
  %s3 = inlined_call_operand.hbm [shape: bf16[32,32], index: 3, kind: input, shape index: {}]
  %s4 = inlined_call_operand.hbm [shape: bf16[32,32], index: 4, kind: input, shape index: {}]
  %s5 = inlined_call_operand.vmem [shape: f32[1,32], index: 5, kind: input, shape index: {}]
  %s6 = inlined_call_operand.vmem [shape: f32[1,32], index: 6, kind: input, shape index: {}]
  %s7 = inlined_call_operand.vmem [shape: f32[1,32], index: 7, kind: input, shape index: {}]
  %s8 = inlined_call_operand.vmem [shape: f32[1,32], index: 8, kind: input, shape index: {}]
  %s9 = inlined_call_operand.hbm [shape: f32[2,8,32], index: 9, kind: output, shape index: {}]
  %s10 = sld [smem:[#allocation0]]
  $region121: #{tpu_custom_call.1} parent=0
    _
  %s12 = ssub.s32 1, %s10
  %s13 = scalar_select 0, %s12, %s10
  $region1: #{tpu_custom_call.1} parent=0
    #allocation8 [shape = 'u8[4096]{0}', space=vmem, size = 0x1000, scoped, tag = 'input window, operand 0']
    #allocation9 [shape = 's32[2]{0}', space=sflag, size = 0x8, scoped, tag = 'scoped memory for tpu_custom_call.1']
    #allocation10 [shape = 's32[2]{0}', space=sflag, size = 0x8, scoped, tag = 'scoped memory for tpu_custom_call.1']
    #allocation11 [shape = 'u8[8192]{0}', space=vmem, size = 0x2000, scoped, tag = 'input window, operand 1, single buffered']
    #allocation12 [shape = 's32[1]{0}', space=sflag, size = 0x4, scoped, tag = 'scoped memory for tpu_custom_call.1']
    #allocation13 [shape = 'u8[8192]{0}', space=vmem, size = 0x2000, scoped, tag = 'input window, operand 2, single buffered']
    #allocation14 [shape = 'u8[8192]{0}', space=vmem, size = 0x2000, scoped, tag = 'input window, operand 3, single buffered']
    #allocation15 [shape = 's32[1]{0}', space=sflag, size = 0x4, scoped, tag = 'scoped memory for tpu_custom_call.1']
    #allocation16 [shape = 'u8[8192]{0}', space=vmem, size = 0x2000, scoped, tag = 'input window, operand 4, single buffered']
    #allocation17 [shape = 'u8[8192]{0}', space=vmem, size = 0x2000, scoped, tag = 'output window, operand 0']
    %14 = vsyncpa [#allocation9], 0
    %s15 = scalar_lea.sflag [#allocation9], 1
    %16 = vsyncpa %s15, 0
    %17 = vsyncpa [#allocation12], 0
    %18 = vsyncpa [#allocation15], 0
    %19 = vsyncpa [#allocation10], 0
    %s20 = scalar_lea.sflag [#allocation10], 1
    %21 = vsyncpa %s20, 0
    loop: start=0, step=1, limit=4
    $region2: #{tpu_custom_call.1} parent=1 // loop_pre_header
      _
    $region3: #{tpu_custom_call.1} parent=1 // loop_header
      %s23 = sphi 0, %s27
      %p24 = scmp.ge.s32.totalorder %s23, 4
      %s30 = sphi 0, %s42
      %s31 = sphi 0, %s38
      %s32 = sphi 0, %s30
      %s33 = sphi 0, %s31
      %s34 = sphi 0, %s32
      %s35 = sphi 0, %s33
      %s45 = sphi 0, %s47
      %s48 = sphi 0, %s45
      %s49 = sphi 0, %s48
      %s65 = sphi 0, %s49
      %s69 = sphi 0, %s69
      %s71 = sphi 0, %s69
      %s72 = sphi 0, %s71
      %s86 = sphi 0, %s72
      %s90 = sphi 0, %s90
      %s92 = sphi 0, %s90
      %s93 = sphi 0, %s92
      %s107 = sphi 0, %s93
      %s111 = sphi 0, %s111
      %s113 = sphi 0, %s111
      %s114 = sphi 0, %s113
      %s128 = sphi 0, %s114
      %s132 = sphi 0, %s132
      %s134 = sphi 0, %s132
      %s135 = sphi 0, %s134
      %s149 = sphi 0, %s135
      %s153 = sphi 0, %s153
      %s155 = sphi 0, %s153
      %s156 = sphi 0, %s155
      %s170 = sphi 0, %s156
      %s174 = sphi 0, %s174
      %s176 = sphi 0, %s174
      %s177 = sphi 0, %s176
      %s191 = sphi 0, %s177
      %s195 = sphi 0, %s195
      %s197 = sphi 0, %s195
      %s198 = sphi 0, %s197
      %s212 = sphi 0, %s198
      %s216 = sphi 0, %s216
      %s218 = sphi 0, %s216
      %s219 = sphi 0, %s218
      %s233 = sphi 0, %s219
      %s241 = sphi 0, %s243
      %s244 = sphi 0, %s241
      %s245 = sphi 0, %s244
      %s261 = sphi 0, %s245
    $region4: #{tpu_custom_call.1} parent=1 // loop_header_branch
      %26 = sbr.rel (%p24) target = $region8
    $region5: #{tpu_custom_call.1} parent=1 // loop_body
      %s28 = ssub.s32 %s23, 1
      %s29 = ssub.s32 %s23, 2
      %s36 = sadd.s32 1, %s31
      %p37 = scmp.ge.s32.totalorder %s36, 1
      %s38 = scalar_select %p37, 0, %s36
      %s39 = sadd.s32 1, %s30
      %s40 = scalar_select %p37, %s39, %s30
      %p41 = scmp.ge.s32.totalorder %s40, 2
      %s42 = scalar_select %p41, 0, %s40
      %s43 = ssub.s32 %s30, %s42
      %p44 = scmp.eq.s32.totalorder %s43, 0
      %s46 = sadd.s32 %s45, 1
      %s47 = scalar_select %p44, %s45, %s46
      %p50 = pneg %p44
      %p51 = scmp.eq.s32.totalorder %s23, 1
      %p52 = por %p50, %p51
      %p53 = scmp.ne.s32.totalorder %s45, %s48
      %p54 = scmp.eq.s32.totalorder %s23, 0
      %p55 = por %p53, %p54
      %p56 = scmp.ne.s32.totalorder %s45, %s48
      %p57 = scmp.eq.s32.totalorder %s28, 1
      %p58 = por %p56, %p57
      %p59 = scmp.ne.s32.totalorder %s48, %s49
      %p60 = scmp.eq.s32.totalorder %s28, 0
      %p61 = por %p59, %p60
      %p62 = scmp.ne.s32.totalorder %s48, %s49
      %p63 = scmp.eq.s32.totalorder %s29, 1
      %p64 = por %p62, %p63
      %p66 = scmp.ne.s32.totalorder %s49, %s65
      %p67 = scmp.eq.s32.totalorder %s29, 0
      %p68 = por %p66, %p67
      %s70 = sadd.s32 %s69, 1
      %p73 = scmp.eq.s32.totalorder %s23, 1
      %p74 = scmp.ne.s32.totalorder %s69, %s71
      %p75 = scmp.eq.s32.totalorder %s23, 0
      %p76 = por %p74, %p75
      %p77 = scmp.ne.s32.totalorder %s69, %s71
      %p78 = scmp.eq.s32.totalorder %s28, 1
      %p79 = por %p77, %p78
      %p80 = scmp.ne.s32.totalorder %s71, %s72
      %p81 = scmp.eq.s32.totalorder %s28, 0
      %p82 = por %p80, %p81
      %p83 = scmp.ne.s32.totalorder %s71, %s72
      %p84 = scmp.eq.s32.totalorder %s29, 1
      %p85 = por %p83, %p84
      %p87 = scmp.ne.s32.totalorder %s72, %s86
      %p88 = scmp.eq.s32.totalorder %s29, 0
      %p89 = por %p87, %p88
      %s91 = sadd.s32 %s90, 1
      %p94 = scmp.eq.s32.totalorder %s23, 1
      %p95 = scmp.ne.s32.totalorder %s90, %s92
      %p96 = scmp.eq.s32.totalorder %s23, 0
      %p97 = por %p95, %p96
      %p98 = scmp.ne.s32.totalorder %s90, %s92
      %p99 = scmp.eq.s32.totalorder %s28, 1
      %p100 = por %p98, %p99
      %p101 = scmp.ne.s32.totalorder %s92, %s93
      %p102 = scmp.eq.s32.totalorder %s28, 0
      %p103 = por %p101, %p102
      %p104 = scmp.ne.s32.totalorder %s92, %s93
      %p105 = scmp.eq.s32.totalorder %s29, 1
      %p106 = por %p104, %p105
      %p108 = scmp.ne.s32.totalorder %s93, %s107
      %p109 = scmp.eq.s32.totalorder %s29, 0
      %p110 = por %p108, %p109
      %s112 = sadd.s32 %s111, 1
      %p115 = scmp.eq.s32.totalorder %s23, 1
      %p116 = scmp.ne.s32.totalorder %s111, %s113
      %p117 = scmp.eq.s32.totalorder %s23, 0
      %p118 = por %p116, %p117
      %p119 = scmp.ne.s32.totalorder %s111, %s113
      %p120 = scmp.eq.s32.totalorder %s28, 1
      %p121 = por %p119, %p120
      %p122 = scmp.ne.s32.totalorder %s113, %s114
      %p123 = scmp.eq.s32.totalorder %s28, 0
      %p124 = por %p122, %p123
      %p125 = scmp.ne.s32.totalorder %s113, %s114
      %p126 = scmp.eq.s32.totalorder %s29, 1
      %p127 = por %p125, %p126
      %p129 = scmp.ne.s32.totalorder %s114, %s128
      %p130 = scmp.eq.s32.totalorder %s29, 0
      %p131 = por %p129, %p130
      %s133 = sadd.s32 %s132, 1
      %p136 = scmp.eq.s32.totalorder %s23, 1
      %p137 = scmp.ne.s32.totalorder %s132, %s134
      %p138 = scmp.eq.s32.totalorder %s23, 0
      %p139 = por %p137, %p138
      %p140 = scmp.ne.s32.totalorder %s132, %s134
      %p141 = scmp.eq.s32.totalorder %s28, 1
      %p142 = por %p140, %p141
      %p143 = scmp.ne.s32.totalorder %s134, %s135
      %p144 = scmp.eq.s32.totalorder %s28, 0
      %p145 = por %p143, %p144
      %p146 = scmp.ne.s32.totalorder %s134, %s135
      %p147 = scmp.eq.s32.totalorder %s29, 1
      %p148 = por %p146, %p147
      %p150 = scmp.ne.s32.totalorder %s135, %s149
      %p151 = scmp.eq.s32.totalorder %s29, 0
      %p152 = por %p150, %p151
      %s154 = sadd.s32 %s153, 1
      %p157 = scmp.eq.s32.totalorder %s23, 1
      %p158 = scmp.ne.s32.totalorder %s153, %s155
      %p159 = scmp.eq.s32.totalorder %s23, 0
      %p160 = por %p158, %p159
      %p161 = scmp.ne.s32.totalorder %s153, %s155
      %p162 = scmp.eq.s32.totalorder %s28, 1
      %p163 = por %p161, %p162
      %p164 = scmp.ne.s32.totalorder %s155, %s156
      %p165 = scmp.eq.s32.totalorder %s28, 0
      %p166 = por %p164, %p165
      %p167 = scmp.ne.s32.totalorder %s155, %s156
      %p168 = scmp.eq.s32.totalorder %s29, 1
      %p169 = por %p167, %p168
      %p171 = scmp.ne.s32.totalorder %s156, %s170
      %p172 = scmp.eq.s32.totalorder %s29, 0
      %p173 = por %p171, %p172
      %s175 = sadd.s32 %s174, 1
      %p178 = scmp.eq.s32.totalorder %s23, 1
      %p179 = scmp.ne.s32.totalorder %s174, %s176
      %p180 = scmp.eq.s32.totalorder %s23, 0
      %p181 = por %p179, %p180
      %p182 = scmp.ne.s32.totalorder %s174, %s176
      %p183 = scmp.eq.s32.totalorder %s28, 1
      %p184 = por %p182, %p183
      %p185 = scmp.ne.s32.totalorder %s176, %s177
      %p186 = scmp.eq.s32.totalorder %s28, 0
      %p187 = por %p185, %p186
      %p188 = scmp.ne.s32.totalorder %s176, %s177
      %p189 = scmp.eq.s32.totalorder %s29, 1
      %p190 = por %p188, %p189
      %p192 = scmp.ne.s32.totalorder %s177, %s191
      %p193 = scmp.eq.s32.totalorder %s29, 0
      %p194 = por %p192, %p193
      %s196 = sadd.s32 %s195, 1
      %p199 = scmp.eq.s32.totalorder %s23, 1
      %p200 = scmp.ne.s32.totalorder %s195, %s197
      %p201 = scmp.eq.s32.totalorder %s23, 0
      %p202 = por %p200, %p201
      %p203 = scmp.ne.s32.totalorder %s195, %s197
      %p204 = scmp.eq.s32.totalorder %s28, 1
      %p205 = por %p203, %p204
      %p206 = scmp.ne.s32.totalorder %s197, %s198
      %p207 = scmp.eq.s32.totalorder %s28, 0
      %p208 = por %p206, %p207
      %p209 = scmp.ne.s32.totalorder %s197, %s198
      %p210 = scmp.eq.s32.totalorder %s29, 1
      %p211 = por %p209, %p210
      %p213 = scmp.ne.s32.totalorder %s198, %s212
      %p214 = scmp.eq.s32.totalorder %s29, 0
      %p215 = por %p213, %p214
      %s217 = sadd.s32 %s216, 1
      %p220 = scmp.eq.s32.totalorder %s23, 1
      %p221 = scmp.ne.s32.totalorder %s216, %s218
      %p222 = scmp.eq.s32.totalorder %s23, 0
      %p223 = por %p221, %p222
      %p224 = scmp.ne.s32.totalorder %s216, %s218
      %p225 = scmp.eq.s32.totalorder %s28, 1
      %p226 = por %p224, %p225
      %p227 = scmp.ne.s32.totalorder %s218, %s219
      %p228 = scmp.eq.s32.totalorder %s28, 0
      %p229 = por %p227, %p228
      %p230 = scmp.ne.s32.totalorder %s218, %s219
      %p231 = scmp.eq.s32.totalorder %s29, 1
      %p232 = por %p230, %p231
      %p234 = scmp.ne.s32.totalorder %s219, %s233
      %p235 = scmp.eq.s32.totalorder %s29, 0
      %p236 = por %p234, %p235
      %s237 = ssub.s32 %s30, %s42
      %s238 = ssub.s32 %s31, %s38
      %s239 = sor.u32 %s237, %s238
      %p240 = scmp.eq.s32.totalorder %s239, 0
      %s242 = sadd.s32 %s241, 1
      %s243 = scalar_select %p240, %s241, %s242
      %p246 = pneg %p240
      %p247 = scmp.eq.s32.totalorder %s23, 1
      %p248 = por %p246, %p247
      %p249 = scmp.ne.s32.totalorder %s241, %s244
      %p250 = scmp.eq.s32.totalorder %s23, 0
      %p251 = por %p249, %p250
      %p252 = scmp.ne.s32.totalorder %s241, %s244
      %p253 = scmp.eq.s32.totalorder %s28, 1
      %p254 = por %p252, %p253
      %p255 = scmp.ne.s32.totalorder %s244, %s245
      %p256 = scmp.eq.s32.totalorder %s28, 0
      %p257 = por %p255, %p256
      %p258 = scmp.ne.s32.totalorder %s244, %s245
      %p259 = scmp.eq.s32.totalorder %s29, 1
      %p260 = por %p258, %p259
      %p262 = scmp.ne.s32.totalorder %s245, %s261
      %p263 = scmp.eq.s32.totalorder %s29, 0
      %p264 = por %p262, %p263
      %p265 = scmp.le.s32.totalorder 1, %s23
      %p266 = scmp.lt.s32.totalorder %s23, 3
      %p267 = pnand %p265, %p266
      %p268 = pneg %p267
      // Predicated region
      $region9: #{tpu_custom_call.1} parent=5 // pred_check
        _
      $region10: #{tpu_custom_call.1} parent=5 // pred_check_branch
        %270 = sbr.rel (%p267) target = $region12
      $region11: #{tpu_custom_call.1} parent=5 // pred_region
        %s271 = ssub.s32 %s23, 1
        // Predicated region
        $region13: #{tpu_custom_call.1} parent=11 // pred_check
          %p272 = pneg %p82
        $region14: #{tpu_custom_call.1} parent=11 // pred_check_branch
          %274 = sbr.rel (%p272) target = $region16
        $region15: #{tpu_custom_call.1} parent=11 // pred_region
          %s276 = ssub.s32 256, 256
          %277 = vsyncadd [#allocation12], %s276
          %s278 = sshll.u32 [#allocation11], 4
          %s279 = int_to_ptr.vmem [resolvable:$true] %s278
          %284 = dma.hbm_to_vmem [thread:$0]  %s1, 256, %s279, [#allocation12], 64, 64, 4
        $region16: #{tpu_custom_call.1} parent=11 // pred_fallthru
          _
        // Predicated region
        $region17: #{tpu_custom_call.1} parent=11 // pred_check
          %p285 = pneg %p103
        $region18: #{tpu_custom_call.1} parent=11 // pred_check_branch
          %287 = sbr.rel (%p285) target = $region20
        $region19: #{tpu_custom_call.1} parent=11 // pred_region
          %s289 = ssub.s32 256, 256
          %290 = vsyncadd [#allocation12], %s289
          %s291 = sshll.u32 [#allocation13], 4
          %s292 = int_to_ptr.vmem [resolvable:$true] %s291
          %297 = dma.hbm_to_vmem [thread:$0]  %s2, 256, %s292, [#allocation12], 64, 64, 4
        $region20: #{tpu_custom_call.1} parent=11 // pred_fallthru
          _
        // Predicated region
        $region21: #{tpu_custom_call.1} parent=11 // pred_check
          %p298 = pneg %p124
        $region22: #{tpu_custom_call.1} parent=11 // pred_check_branch
          %300 = sbr.rel (%p298) target = $region24
        $region23: #{tpu_custom_call.1} parent=11 // pred_region
          %s302 = ssub.s32 256, 256
          %303 = vsyncadd [#allocation15], %s302
          %s304 = sshll.u32 [#allocation14], 4
          %s305 = int_to_ptr.vmem [resolvable:$true] %s304
          %310 = dma.hbm_to_vmem [thread:$0]  %s3, 256, %s305, [#allocation15], 64, 64, 4
        $region24: #{tpu_custom_call.1} parent=11 // pred_fallthru
          _
        // Predicated region
        $region25: #{tpu_custom_call.1} parent=11 // pred_check
          %p311 = pneg %p145
        $region26: #{tpu_custom_call.1} parent=11 // pred_check_branch
          %313 = sbr.rel (%p311) target = $region28
        $region27: #{tpu_custom_call.1} parent=11 // pred_region
          %s315 = ssub.s32 256, 256
          %316 = vsyncadd [#allocation15], %s315
          %s317 = sshll.u32 [#allocation16], 4
          %s318 = int_to_ptr.vmem [resolvable:$true] %s317
          %323 = dma.hbm_to_vmem [thread:$0]  %s4, 256, %s318, [#allocation15], 64, 64, 4
        $region28: #{tpu_custom_call.1} parent=11 // pred_fallthru
          _
        // Predicated region
        $region29: #{tpu_custom_call.1} parent=11 // pred_check
          %p324 = pneg %p166
        $region30: #{tpu_custom_call.1} parent=11 // pred_check_branch
          %326 = sbr.rel (%p324) target = $region32
        $region31: #{tpu_custom_call.1} parent=11 // pred_region
          _
        $region32: #{tpu_custom_call.1} parent=11 // pred_fallthru
          _
        // Predicated region
        $region33: #{tpu_custom_call.1} parent=11 // pred_check
          %p327 = pneg %p187
        $region34: #{tpu_custom_call.1} parent=11 // pred_check_branch
          %329 = sbr.rel (%p327) target = $region36
        $region35: #{tpu_custom_call.1} parent=11 // pred_region
          _
        $region36: #{tpu_custom_call.1} parent=11 // pred_fallthru
          _
        // Predicated region
        $region37: #{tpu_custom_call.1} parent=11 // pred_check
          %p330 = pneg %p208
        $region38: #{tpu_custom_call.1} parent=11 // pred_check_branch
          %332 = sbr.rel (%p330) target = $region40
        $region39: #{tpu_custom_call.1} parent=11 // pred_region
          _
        $region40: #{tpu_custom_call.1} parent=11 // pred_fallthru
          _
        // Predicated region
        $region41: #{tpu_custom_call.1} parent=11 // pred_check
          %p333 = pneg %p229
        $region42: #{tpu_custom_call.1} parent=11 // pred_check_branch
          %335 = sbr.rel (%p333) target = $region44
        $region43: #{tpu_custom_call.1} parent=11 // pred_region
          _
        $region44: #{tpu_custom_call.1} parent=11 // pred_fallthru
          _
      $region12: #{tpu_custom_call.1} parent=5 // pred_fallthru
        _
      %p336 = scmp.lt.s32.totalorder %s23, 2
      // Predicated region
      $region45: #{tpu_custom_call.1} parent=5 // pred_check
        %p337 = pneg %p336
      $region46: #{tpu_custom_call.1} parent=5 // pred_check_branch
        %339 = sbr.rel (%p337) target = $region48
      $region47: #{tpu_custom_call.1} parent=5 // pred_region
        // Predicated region
        $region49: #{tpu_custom_call.1} parent=47 // pred_check
          %p340 = pneg %p55
        $region50: #{tpu_custom_call.1} parent=47 // pred_check_branch
          %342 = sbr.rel (%p340) target = $region52
        $region51: #{tpu_custom_call.1} parent=47 // pred_region
          %s343 = sand.u32 %s45, 1
          %s344 = scalar_lea.sflag [#allocation9], %s343
          %s345 = sand.u32 %s45, 1
          %s346 = smul.addr %s345, 4
          %s347 = scalar_lea.vmem [#allocation8], %s346
          %s349 = ssub.s32 64, 64
          %350 = vsyncadd %s344, %s349
          %s351 = smul.addr %s30, 64
          %s352 = scalar_lea.hbm %s0, %s351
          %s354 = sshll.u32 %s347, 4
          %s355 = int_to_ptr.vmem [resolvable:$true] %s354
          %357 = dma.hbm_to_vmem [thread:$0]  %s352, 64, %s355, %s344
        $region52: #{tpu_custom_call.1} parent=47 // pred_fallthru
          _
      $region48: #{tpu_custom_call.1} parent=5 // pred_fallthru
        _
      %p358 = scmp.le.s32.totalorder 1, %s23
      %p359 = scmp.lt.s32.totalorder %s23, 3
      %p360 = pnand %p358, %p359
      %p361 = pneg %p360
      // Predicated region
      $region53: #{tpu_custom_call.1} parent=5 // pred_check
        _
      $region54: #{tpu_custom_call.1} parent=5 // pred_check_branch
        %363 = sbr.rel (%p360) target = $region56
      $region55: #{tpu_custom_call.1} parent=5 // pred_region
        %s364 = ssub.s32 %s23, 1
        %s365 = sand.u32 %s48, 1
        %s366 = scalar_lea.sflag [#allocation9], %s365
        %s367 = sand.u32 %s48, 1
        %s368 = smul.addr %s367, 4
        %s369 = scalar_lea.vmem [#allocation8], %s368
        // Predicated region
        $region57: #{tpu_custom_call.1} parent=55 // pred_check
          %p370 = pneg %p61
        $region58: #{tpu_custom_call.1} parent=55 // pred_check_branch
          %372 = sbr.rel (%p370) target = $region60
        $region59: #{tpu_custom_call.1} parent=55 // pred_region
          %373 = dma.done %s366, 64
        $region60: #{tpu_custom_call.1} parent=55 // pred_fallthru
          _
        // Predicated region
        $region61: #{tpu_custom_call.1} parent=55 // pred_check
          %p374 = pneg %p82
        $region62: #{tpu_custom_call.1} parent=55 // pred_check_branch
          %376 = sbr.rel (%p374) target = $region64
        $region63: #{tpu_custom_call.1} parent=55 // pred_region
          %377 = dma.done [#allocation12], 256
        $region64: #{tpu_custom_call.1} parent=55 // pred_fallthru
          _
        // Predicated region
        $region65: #{tpu_custom_call.1} parent=55 // pred_check
          %p378 = pneg %p103
        $region66: #{tpu_custom_call.1} parent=55 // pred_check_branch
          %380 = sbr.rel (%p378) target = $region68
        $region67: #{tpu_custom_call.1} parent=55 // pred_region
          %381 = dma.done [#allocation12], 256
        $region68: #{tpu_custom_call.1} parent=55 // pred_fallthru
          _
        // Predicated region
        $region69: #{tpu_custom_call.1} parent=55 // pred_check
          %p382 = pneg %p124
        $region70: #{tpu_custom_call.1} parent=55 // pred_check_branch
          %384 = sbr.rel (%p382) target = $region72
        $region71: #{tpu_custom_call.1} parent=55 // pred_region
          %385 = dma.done [#allocation15], 256
        $region72: #{tpu_custom_call.1} parent=55 // pred_fallthru
          _
        // Predicated region
        $region73: #{tpu_custom_call.1} parent=55 // pred_check
          %p386 = pneg %p145
        $region74: #{tpu_custom_call.1} parent=55 // pred_check_branch
          %388 = sbr.rel (%p386) target = $region76
        $region75: #{tpu_custom_call.1} parent=55 // pred_region
          %389 = dma.done [#allocation15], 256
        $region76: #{tpu_custom_call.1} parent=55 // pred_fallthru
          _
        %s390 = sand.u32 %s48, 1
        %s391 = scalar_lea.sflag [#allocation9], %s390
        %s392 = sand.u32 %s48, 1
        %s393 = smul.addr %s392, 4
        %s394 = scalar_lea.vmem [#allocation8], %s393
        %p395 = pneg %p61
        %p396 = pneg %p58
        %p397 = pneg %p82
        %p398 = pneg %p79
        %p399 = pneg %p103
        %p400 = pneg %p100
        %p401 = pneg %p124
        %p402 = pneg %p121
        %p403 = pneg %p145
        %p404 = pneg %p142
        %p405 = pneg %p166
        %p406 = pneg %p163
        %p407 = pneg %p187
        %p408 = pneg %p184
        %p409 = pneg %p208
        %p410 = pneg %p205
        %p411 = pneg %p229
        %p412 = pneg %p226
        %p413 = pneg %p257
        %p414 = pneg %p254
        %s415 = sand.u32 %s244, 1
        %s416 = scalar_lea.sflag [#allocation10], %s415
        %s417 = sand.u32 %s244, 1
        %s418 = smul.addr %s417, 8
        %s419 = scalar_lea.vmem [#allocation17], %s418
        %p421 = scmp.eq.s32.totalorder %s33, 0
        // Predicated region
        $region77: #{tpu_custom_call.1} parent=55 // pred_check
          %p422 = pneg %p421
        $region78: #{tpu_custom_call.1} parent=55 // pred_check_branch
          %424 = sbr.rel (%p422) target = $region80
        $region79: #{tpu_custom_call.1} parent=55 // pred_region
          %v425 = vld [vmem:[%s369] sm:$0xf]
          %v426 = vld [vmem:[#allocation13] sm:$0xf]
          %v427 = vld [vmem:[#allocation13 + $0x4] sm:$0xf]
          %v428 = vld [vmem:[#allocation13 + $0x8] sm:$0xf]
          %v429 = vld [vmem:[#allocation13 + $0xc] sm:$0xf]
          %v430 = vld [vmem:[%s6] sm:$0x1]
          %v432 = vlaneseq
          %v433 = vshrl.u32 %v432, 7
          %v434 = vsub.s32 0, %v433
          %v435 = vrot.slane %v430, %v434
          %v441 = vunpack.c.l.b16 %v426
          %v442 = vunpack.c.l.b16 %v427
          %v443 = vunpack.c.l.b16 %v428
          %v444 = vunpack.c.l.b16 %v429
          %v445 = vpack.c.b16 %v442, %v441
          %v446 = vpack.c.b16 %v444, %v443
          %vm449 = vcmask 261120
          %v451 = vsel %vm449, %v425, 0
          %453 = vmatprep.subr.bf16.mxu0 0
          %454 = vmatpush1.bf16.msra.mxu0 %v445
          %455 = vmatprep.subr.bf16.mxu0 0
          %456 = vmatpush1.bf16.msra.mxu0 %v446
          %457 = vmatprep.subr.bf16.mxu0 0
          %458 = vmatpush1.bf16.msra.mxu0 0
          %459 = vmatprep.subr.bf16.mxu0 0
          %460 = vmatpush1.bf16.msra.mxu0 0
          %461 = vmatprep.subr.bf16.mxu0 0
          %462 = vmatpush1.bf16.msra.mxu0 0
          %463 = vmatprep.subr.bf16.mxu0 0
          %464 = vmatpush1.bf16.msra.mxu0 0
          %465 = vmatprep.subr.bf16.mxu0 0
          %466 = vmatpush1.bf16.msra.mxu0 0
          %467 = vmatprep.subr.bf16.mxu0 0
          %468 = vmatpush1.bf16.msra.mxu0 0
          %469 = vmatprep.subr.bf16.mxu0 0
          %470 = vmatpush1.bf16.msra.mxu0 0
          %471 = vmatprep.subr.bf16.mxu0 0
          %472 = vmatpush1.bf16.msra.mxu0 0
          %473 = vmatprep.subr.bf16.mxu0 0
          %474 = vmatpush1.bf16.msra.mxu0 0
          %475 = vmatprep.subr.bf16.mxu0 0
          %476 = vmatpush1.bf16.msra.mxu0 0
          %477 = vmatprep.subr.bf16.mxu0 0
          %478 = vmatpush1.bf16.msra.mxu0 0
          %479 = vmatprep.subr.bf16.mxu0 0
          %480 = vmatpush1.bf16.msra.mxu0 0
          %481 = vmatprep.subr.bf16.mxu0 0
          %482 = vmatpush1.bf16.msra.mxu0 0
          %483 = vmatprep.subr.bf16.mxu0 0
          %484 = vmatpush1.bf16.msra.mxu0 0
          %485 = vmatprep.mubr.bf16.mxu0 0
          %486 = vmatmul.mubr.bf16.gmra.mrb[0].mxu0 %v451
          %v487 = vpop.f32.mrb[0].mxu0
          %v488 = vadd.f32 %v435, %v487
          %v489 = vpop.f32.mrb[0].mxu0
          %v490 = vpop.f32.mrb[0].mxu0
          %v491 = vpop.f32.mrb[0].mxu0
          %492 = vdwg.mxu0
          %v493 = vld [vmem:[#allocation14] sm:$0xf]
          %v494 = vld [vmem:[#allocation14 + $0x4] sm:$0xf]
          %v495 = vld [vmem:[#allocation14 + $0x8] sm:$0xf]
          %v496 = vld [vmem:[#allocation14 + $0xc] sm:$0xf]
          %v497 = vld [vmem:[%s7] sm:$0x1]
          %v499 = vlaneseq
          %v500 = vshrl.u32 %v499, 7
          %v501 = vsub.s32 0, %v500
          %v502 = vrot.slane %v497, %v501
          %v508 = vunpack.c.l.b16 %v493
          %v509 = vunpack.c.l.b16 %v494
          %v510 = vunpack.c.l.b16 %v495
          %v511 = vunpack.c.l.b16 %v496
          %v512 = vpack.c.b16 %v509, %v508
          %v513 = vpack.c.b16 %v511, %v510
          %516 = vmatprep.subr.bf16.mxu0 0
          %517 = vmatpush1.bf16.msra.mxu0 %v512
          %518 = vmatprep.subr.bf16.mxu0 0
          %519 = vmatpush1.bf16.msra.mxu0 %v513
          %520 = vmatprep.subr.bf16.mxu0 0
          %521 = vmatpush1.bf16.msra.mxu0 0
          %522 = vmatprep.subr.bf16.mxu0 0
          %523 = vmatpush1.bf16.msra.mxu0 0
          %524 = vmatprep.subr.bf16.mxu0 0
          %525 = vmatpush1.bf16.msra.mxu0 0
          %526 = vmatprep.subr.bf16.mxu0 0
          %527 = vmatpush1.bf16.msra.mxu0 0
          %528 = vmatprep.subr.bf16.mxu0 0
          %529 = vmatpush1.bf16.msra.mxu0 0
          %530 = vmatprep.subr.bf16.mxu0 0
          %531 = vmatpush1.bf16.msra.mxu0 0
          %532 = vmatprep.subr.bf16.mxu0 0
          %533 = vmatpush1.bf16.msra.mxu0 0
          %534 = vmatprep.subr.bf16.mxu0 0
          %535 = vmatpush1.bf16.msra.mxu0 0
          %536 = vmatprep.subr.bf16.mxu0 0
          %537 = vmatpush1.bf16.msra.mxu0 0
          %538 = vmatprep.subr.bf16.mxu0 0
          %539 = vmatpush1.bf16.msra.mxu0 0
          %540 = vmatprep.subr.bf16.mxu0 0
          %541 = vmatpush1.bf16.msra.mxu0 0
          %542 = vmatprep.subr.bf16.mxu0 0
          %543 = vmatpush1.bf16.msra.mxu0 0
          %544 = vmatprep.subr.bf16.mxu0 0
          %545 = vmatpush1.bf16.msra.mxu0 0
          %546 = vmatprep.subr.bf16.mxu0 0
          %547 = vmatpush1.bf16.msra.mxu0 0
          %548 = vmatprep.mubr.bf16.mxu0 0
          %549 = vmatmul.mubr.bf16.gmra.mrb[0].mxu0 %v451
          %v550 = vpop.f32.mrb[0].mxu0
          %v551 = vadd.f32 %v502, %v550
          %v552 = vpop.f32.mrb[0].mxu0
          %v553 = vpop.f32.mrb[0].mxu0
          %v554 = vpop.f32.mrb[0].mxu0
          %555 = vdwg.mxu0
          %v556 = vpack.c.bf16 %v488, %v488
          %vm557 = vcmask 60416
          %558 = vst.msk [vmem:[#allocation2] sm:$0xf] %vm557, %v556
          %v559 = vpack.c.bf16 %v551, %v551
          %560 = vst.msk [vmem:[#allocation3] sm:$0xf] %vm557, %v559
          %v562 = vunpack.c.l.b16 %v556
          %v563 = vpack.c.b16 %v562, %v562
          %564 = vrot.lane.b32.xlu0 %v563, 120
          %v565 = vpop.permute.xlu0 %564
          %s567 = scalar_lea.vmem [#allocation2], 4
          %568 = vst.msk [vmem:[%s567] sm:$0xf] %vm557, %v565
          %v570 = vunpack.c.l.b16 %v559
          %v571 = vpack.c.b16 %v570, %v570
          %572 = vrot.lane.b32.xlu0 %v571, 120
          %v573 = vpop.permute.xlu0 %572
          %s575 = scalar_lea.vmem [#allocation3], 4
          %576 = vst.msk [vmem:[%s575] sm:$0xf] %vm557, %v573
          %577 = vrot.lane.b32.xlu0 %v563, 112
          %v578 = vpop.permute.xlu0 %577
          %s580 = scalar_lea.vmem [#allocation2], 8
          %581 = vst.msk [vmem:[%s580] sm:$0xf] %vm557, %v578
          %582 = vrot.lane.b32.xlu0 %v571, 112
          %v583 = vpop.permute.xlu0 %582
          %s585 = scalar_lea.vmem [#allocation3], 8
          %586 = vst.msk [vmem:[%s585] sm:$0xf] %vm557, %v583
          %587 = vrot.lane.b32.xlu0 %v563, 104
          %v588 = vpop.permute.xlu0 %587
          %s590 = scalar_lea.vmem [#allocation2], 12
          %591 = vst.msk [vmem:[%s590] sm:$0xf] %vm557, %v588
          %592 = vrot.lane.b32.xlu0 %v571, 104
          %v593 = vpop.permute.xlu0 %592
          %s595 = scalar_lea.vmem [#allocation3], 12
          %596 = vst.msk [vmem:[%s595] sm:$0xf] %vm557, %v593
        $region80: #{tpu_custom_call.1} parent=55 // pred_fallthru
          _
        %s597 = smul.u32 %s33, 8
        %s598 = sshra.s32 %s597, 3
        %s599 = sand.u32 %s597, 7
        %s600 = smul.addr %s598, 4
        %s601 = scalar_lea.vmem %s369, %s600 [#allocation8]
        %v602 = vld [vmem:[%s601] sm:$0xf]
        %v603 = vld [vmem:[#allocation11] sm:$0xf]
        %v604 = vld [vmem:[#allocation11 + $0x4] sm:$0xf]
        %v605 = vld [vmem:[#allocation11 + $0x8] sm:$0xf]
        %v606 = vld [vmem:[#allocation11 + $0xc] sm:$0xf]
        %v607 = vld [vmem:[%s5] sm:$0x1]
        %v609 = vlaneseq
        %v610 = vshrl.u32 %v609, 7
        %v611 = vsub.s32 0, %v610
        %v612 = vrot.slane %v607, %v611
        %v618 = vunpack.c.l.b16 %v603
        %v619 = vunpack.c.l.b16 %v604
        %v620 = vunpack.c.l.b16 %v605
        %v621 = vunpack.c.l.b16 %v606
        %v622 = vpack.c.b16 %v619, %v618
        %v623 = vpack.c.b16 %v621, %v620
        %vm626 = vcmask 261120
        %v628 = vsel %vm626, %v602, 0
        %630 = vmatprep.subr.bf16.mxu0 0
        %631 = vmatpush1.bf16.msra.mxu0 %v622
        %632 = vmatprep.subr.bf16.mxu0 0
        %633 = vmatpush1.bf16.msra.mxu0 %v623
        %634 = vmatprep.subr.bf16.mxu0 0
        %635 = vmatpush1.bf16.msra.mxu0 0
        %636 = vmatprep.subr.bf16.mxu0 0
        %637 = vmatpush1.bf16.msra.mxu0 0
        %638 = vmatprep.subr.bf16.mxu0 0
        %639 = vmatpush1.bf16.msra.mxu0 0
        %640 = vmatprep.subr.bf16.mxu0 0
        %641 = vmatpush1.bf16.msra.mxu0 0
        %642 = vmatprep.subr.bf16.mxu0 0
        %643 = vmatpush1.bf16.msra.mxu0 0
        %644 = vmatprep.subr.bf16.mxu0 0
        %645 = vmatpush1.bf16.msra.mxu0 0
        %646 = vmatprep.subr.bf16.mxu0 0
        %647 = vmatpush1.bf16.msra.mxu0 0
        %648 = vmatprep.subr.bf16.mxu0 0
        %649 = vmatpush1.bf16.msra.mxu0 0
        %650 = vmatprep.subr.bf16.mxu0 0
        %651 = vmatpush1.bf16.msra.mxu0 0
        %652 = vmatprep.subr.bf16.mxu0 0
        %653 = vmatpush1.bf16.msra.mxu0 0
        %654 = vmatprep.subr.bf16.mxu0 0
        %655 = vmatpush1.bf16.msra.mxu0 0
        %656 = vmatprep.subr.bf16.mxu0 0
        %657 = vmatpush1.bf16.msra.mxu0 0
        %658 = vmatprep.subr.bf16.mxu0 0
        %659 = vmatpush1.bf16.msra.mxu0 0
        %660 = vmatprep.subr.bf16.mxu0 0
        %661 = vmatpush1.bf16.msra.mxu0 0
        %662 = vmatprep.mubr.bf16.mxu0 0
        %663 = vmatmul.mubr.bf16.gmra.mrb[0].mxu0 %v628
        %v664 = vpop.f32.mrb[0].mxu0
        %v665 = vadd.f32 %v612, %v664
        %v666 = vpop.f32.mrb[0].mxu0
        %v667 = vpop.f32.mrb[0].mxu0
        %v668 = vpop.f32.mrb[0].mxu0
        %669 = vdwg.mxu0
        %v670 = vmul.f32 %v665, 0.35355338
        %v671 = vpack.c.bf16 %v670, %v670
        %v672 = vlaneseq
        %v673 = vshrl.u32 %v672, 7
        %v674 = vstv %s597
        %v675 = vadd.s32 %v673, %v674
        %v676 = vlaneseq
        %v677 = vand.u32 %v676, 127
        %s678 = sadd.s32 %s33, 1
        %vm679 = vcmask 7168
        %680 = vst.msk [vmem:[#allocation5] sm:$0xff] %vm679, -1e+30
        %681 = vst.msk [vmem:[#allocation6] sm:$0xff] %vm679, 0.0
        %vm682 = vcmask 64512
        %683 = vst.msk [vmem:[#allocation7] sm:$0xff] %vm682, 0.0
        // While loop
        $region81: #{tpu_custom_call.1} parent=55 // loop_pre_header
          _
        $region82: #{tpu_custom_call.1} parent=55 // loop_header
          %s685 = sphi 0, %s687
          %p686 = scmp.ge.s32.totalorder %s685, %s678
        $region83: #{tpu_custom_call.1} parent=55 // loop_header_branch
          %689 = sbr.rel (%p686) target = $region87
        $region84: #{tpu_custom_call.1} parent=55 // loop_body
          %s690 = smul.u32 %s685, 8
          %s691 = sshra.s32 %s690, 3
          %s692 = sand.u32 %s690, 7
          %s693 = smul.addr %s691, 4
          %s694 = scalar_lea.vmem [#allocation2], %s693
          %v695 = vld [vmem:[%s694] sm:$0xf]
          %s696 = smul.addr %s691, 4
          %s697 = scalar_lea.vmem [#allocation3], %s696
          %v698 = vld [vmem:[%s697] sm:$0xf]
          %v700 = vsel %vm682, %v671, 0
          %v703 = vsel %vm682, %v695, 0
          %705 = vmatprep.subr.bf16.mxu0 0
          %706 = vmatpush1.bf16.xpose.msra.mxu0 %v703
          %707 = vmatprep.subr.bf16.mxu0 0
          %708 = vmatpush1.bf16.xpose.msra.mxu0 0
          %709 = vmatprep.subr.bf16.mxu0 0
          %710 = vmatpush1.bf16.xpose.msra.mxu0 0
          %711 = vmatprep.subr.bf16.mxu0 0
          %712 = vmatpush1.bf16.xpose.msra.mxu0 0
          %713 = vmatprep.subr.bf16.mxu0 0
          %714 = vmatpush1.bf16.xpose.msra.mxu0 0
          %715 = vmatprep.subr.bf16.mxu0 0
          %716 = vmatpush1.bf16.xpose.msra.mxu0 0
          %717 = vmatprep.subr.bf16.mxu0 0
          %718 = vmatpush1.bf16.xpose.msra.mxu0 0
          %719 = vmatprep.subr.bf16.mxu0 0
          %720 = vmatpush1.bf16.xpose.msra.mxu0 0
          %721 = vmatprep.subr.bf16.mxu0 0
          %722 = vmatpush1.bf16.xpose.msra.mxu0 0
          %723 = vmatprep.subr.bf16.mxu0 0
          %724 = vmatpush1.bf16.xpose.msra.mxu0 0
          %725 = vmatprep.subr.bf16.mxu0 0
          %726 = vmatpush1.bf16.xpose.msra.mxu0 0
          %727 = vmatprep.subr.bf16.mxu0 0
          %728 = vmatpush1.bf16.xpose.msra.mxu0 0
          %729 = vmatprep.subr.bf16.mxu0 0
          %730 = vmatpush1.bf16.xpose.msra.mxu0 0
          %731 = vmatprep.subr.bf16.mxu0 0
          %732 = vmatpush1.bf16.xpose.msra.mxu0 0
          %733 = vmatprep.subr.bf16.mxu0 0
          %734 = vmatpush1.bf16.xpose.msra.mxu0 0
          %735 = vmatprep.subr.bf16.mxu0 0
          %736 = vmatpush1.bf16.xpose.msra.mxu0 0
          %737 = vmatprep.mubr.bf16.mxu0 0
          %738 = vmatmul.mubr.bf16.gmra.mrb[0].mxu0 %v700
          %v739 = vpop.f32.mrb[0].mxu0
          %v740 = vadd.f32 0.0, %v739
          %v741 = vpop.f32.mrb[0].mxu0
          %v742 = vpop.f32.mrb[0].mxu0
          %v743 = vpop.f32.mrb[0].mxu0
          %744 = vdwg.mxu0
          %v745 = vstv %s690
          %v746 = vadd.s32 %v677, %v745
          %vm747 = vcmp.le.s32.totalorder %v746, %v675
          %v748 = vsel %vm747, %v740, -1e+30
          %v749 = vld [vmem:[#allocation5] sm:$0xff]
          %v750 = vsel %vm682, %v748, -inf
          %751 = vmax.xlane.f32.xlu0 %v750
          %v752 = vpop.xlane.xlu0 %751
          %v753 = vmax.f32 %v749, %v752
          %v754 = vsub.f32 %v749, %v753
          %v755 = vmul.f32 %v754, 1.442695
          %v756 = vpow.pop %v755
          %758 = vset.pattern.permute.xlu0 0
          %759 = vperm.xlu0 %758, %v753
          %v760 = vpop.permute.xlu0 %759
          %v762 = vsub.f32 %v748, %v760
          %v763 = vmul.f32 %v762, 1.442695
          %v764 = vpow.pop %v763
          %v765 = vld [vmem:[#allocation6] sm:$0xff]
          %v766 = vmul.f32 %v756, %v765
          %v767 = vsel %vm682, %v764, 0.0
          %768 = vadd.xlane.f32.xlu0 %v767
          %v769 = vpop.xlane.xlu0 %768
          %v770 = vadd.f32 %v766, %v769
          %771 = vst.msk [vmem:[#allocation6] sm:$0xff] %vm679, %v770
          %v772 = vld [vmem:[#allocation7] sm:$0xff]
          %774 = vset.pattern.permute.xlu0 0
          %775 = vperm.xlu0 %774, %v756
          %v776 = vpop.permute.xlu0 %775
          %v778 = vmul.f32 %v776, %v772
          %v779 = vpack.c.bf16 %v764, %v764
          %v781 = vsel %vm682, %v779, 0
          %vm783 = vcmask 1043456
          %v785 = vsel %vm783, %v698, 0
          %787 = vmatprep.subr.bf16.mxu0 0
          %788 = vmatpush1.bf16.msra.mxu0 %v785
          %789 = vmatprep.subr.bf16.mxu0 0
          %790 = vmatpush1.bf16.msra.mxu0 0
          %791 = vmatprep.subr.bf16.mxu0 0
          %792 = vmatpush1.bf16.msra.mxu0 0
          %793 = vmatprep.subr.bf16.mxu0 0
          %794 = vmatpush1.bf16.msra.mxu0 0
          %795 = vmatprep.subr.bf16.mxu0 0
          %796 = vmatpush1.bf16.msra.mxu0 0
          %797 = vmatprep.subr.bf16.mxu0 0
          %798 = vmatpush1.bf16.msra.mxu0 0
          %799 = vmatprep.subr.bf16.mxu0 0
          %800 = vmatpush1.bf16.msra.mxu0 0
          %801 = vmatprep.subr.bf16.mxu0 0
          %802 = vmatpush1.bf16.msra.mxu0 0
          %803 = vmatprep.subr.bf16.mxu0 0
          %804 = vmatpush1.bf16.msra.mxu0 0
          %805 = vmatprep.subr.bf16.mxu0 0
          %806 = vmatpush1.bf16.msra.mxu0 0
          %807 = vmatprep.subr.bf16.mxu0 0
          %808 = vmatpush1.bf16.msra.mxu0 0
          %809 = vmatprep.subr.bf16.mxu0 0
          %810 = vmatpush1.bf16.msra.mxu0 0
          %811 = vmatprep.subr.bf16.mxu0 0
          %812 = vmatpush1.bf16.msra.mxu0 0
          %813 = vmatprep.subr.bf16.mxu0 0
          %814 = vmatpush1.bf16.msra.mxu0 0
          %815 = vmatprep.subr.bf16.mxu0 0
          %816 = vmatpush1.bf16.msra.mxu0 0
          %817 = vmatprep.subr.bf16.mxu0 0
          %818 = vmatpush1.bf16.msra.mxu0 0
          %819 = vmatprep.mubr.bf16.mxu0 0
          %820 = vmatmul.mubr.bf16.gmra.mrb[0].mxu0 %v781
          %v821 = vpop.f32.mrb[0].mxu0
          %v822 = vadd.f32 0.0, %v821
          %v823 = vpop.f32.mrb[0].mxu0
          %v824 = vpop.f32.mrb[0].mxu0
          %v825 = vpop.f32.mrb[0].mxu0
          %826 = vdwg.mxu0
          %v827 = vadd.f32 %v778, %v822
          %828 = vst.msk [vmem:[#allocation7] sm:$0xff] %vm682, %v827
          %829 = vst.msk [vmem:[#allocation5] sm:$0xff] %vm679, %v753
        $region85: #{tpu_custom_call.1} parent=55 // loop_footer
          %s687 = sadd.s32 %s685, 1
        $region86: #{tpu_custom_call.1} parent=55 // loop_footer_branch
          %684 = sbr.rel target = $region82
        $region87: #{tpu_custom_call.1} parent=55 // loop_exit
          _
        %v830 = vld [vmem:[#allocation7] sm:$0xff]
        %v831 = vld [vmem:[#allocation6] sm:$0xff]
        %v832 = vrcp.pop %v831
        %834 = vset.pattern.permute.xlu0 0
        %835 = vperm.xlu0 %834, %v832
        %v836 = vpop.permute.xlu0 %835
        %v838 = vmul.f32 %v830, %v836
        %v839 = vpack.c.bf16 %v838, %v838
        %vm840 = vcmask 60416
        %841 = vst.msk [vmem:[#allocation4] sm:$0xf] %vm840, %v839
        %842 = vst.msk [vmem:[#allocation5] sm:$0xff] %vm679, -1e+30
        %843 = vst.msk [vmem:[#allocation6] sm:$0xff] %vm679, 0.0
        %844 = vst.msk [vmem:[#allocation7] sm:$0xff] %vm682, 0.0
        // While loop
        $region88: #{tpu_custom_call.1} parent=55 // loop_pre_header
          _
        $region89: #{tpu_custom_call.1} parent=55 // loop_header
          %s846 = sphi 0, %s848
          %p847 = scmp.ge.s32.totalorder %s846, %s678
        $region90: #{tpu_custom_call.1} parent=55 // loop_header_branch
          %850 = sbr.rel (%p847) target = $region94
        $region91: #{tpu_custom_call.1} parent=55 // loop_body
          %s851 = smul.u32 %s846, 8
          %s852 = scalar_lea.vmem [#allocation2], 4
          %s853 = sshra.s32 %s851, 3
          %s854 = sand.u32 %s851, 7
          %s855 = smul.addr %s853, 4
          %s856 = scalar_lea.vmem %s852, %s855 [#allocation2]
          %v857 = vld [vmem:[%s856] sm:$0xf]
          %s858 = scalar_lea.vmem [#allocation3], 4
          %s859 = smul.addr %s853, 4
          %s860 = scalar_lea.vmem %s858, %s859 [#allocation3]
          %v861 = vld [vmem:[%s860] sm:$0xf]
          %863 = vrot.lane.b32.xlu0 %v671, 120
          %v864 = vpop.permute.xlu0 %863
          %v866 = vsel %vm682, %v864, 0
          %v869 = vsel %vm682, %v857, 0
          %871 = vmatprep.subr.bf16.mxu0 0
          %872 = vmatpush1.bf16.xpose.msra.mxu0 %v869
          %873 = vmatprep.subr.bf16.mxu0 0
          %874 = vmatpush1.bf16.xpose.msra.mxu0 0
          %875 = vmatprep.subr.bf16.mxu0 0
          %876 = vmatpush1.bf16.xpose.msra.mxu0 0
          %877 = vmatprep.subr.bf16.mxu0 0
          %878 = vmatpush1.bf16.xpose.msra.mxu0 0
          %879 = vmatprep.subr.bf16.mxu0 0
          %880 = vmatpush1.bf16.xpose.msra.mxu0 0
          %881 = vmatprep.subr.bf16.mxu0 0
          %882 = vmatpush1.bf16.xpose.msra.mxu0 0
          %883 = vmatprep.subr.bf16.mxu0 0
          %884 = vmatpush1.bf16.xpose.msra.mxu0 0
          %885 = vmatprep.subr.bf16.mxu0 0
          %886 = vmatpush1.bf16.xpose.msra.mxu0 0
          %887 = vmatprep.subr.bf16.mxu0 0
          %888 = vmatpush1.bf16.xpose.msra.mxu0 0
          %889 = vmatprep.subr.bf16.mxu0 0
          %890 = vmatpush1.bf16.xpose.msra.mxu0 0
          %891 = vmatprep.subr.bf16.mxu0 0
          %892 = vmatpush1.bf16.xpose.msra.mxu0 0
          %893 = vmatprep.subr.bf16.mxu0 0
          %894 = vmatpush1.bf16.xpose.msra.mxu0 0
          %895 = vmatprep.subr.bf16.mxu0 0
          %896 = vmatpush1.bf16.xpose.msra.mxu0 0
          %897 = vmatprep.subr.bf16.mxu0 0
          %898 = vmatpush1.bf16.xpose.msra.mxu0 0
          %899 = vmatprep.subr.bf16.mxu0 0
          %900 = vmatpush1.bf16.xpose.msra.mxu0 0
          %901 = vmatprep.subr.bf16.mxu0 0
          %902 = vmatpush1.bf16.xpose.msra.mxu0 0
          %903 = vmatprep.mubr.bf16.mxu0 0
          %904 = vmatmul.mubr.bf16.gmra.mrb[0].mxu0 %v866
          %v905 = vpop.f32.mrb[0].mxu0
          %v906 = vadd.f32 0.0, %v905
          %v907 = vpop.f32.mrb[0].mxu0
          %v908 = vpop.f32.mrb[0].mxu0
          %v909 = vpop.f32.mrb[0].mxu0
          %910 = vdwg.mxu0
          %v911 = vstv %s851
          %v912 = vadd.s32 %v677, %v911
          %vm913 = vcmp.le.s32.totalorder %v912, %v675
          %v914 = vsel %vm913, %v906, -1e+30
          %v915 = vld [vmem:[#allocation5] sm:$0xff]
          %v916 = vsel %vm682, %v914, -inf
          %917 = vmax.xlane.f32.xlu0 %v916
          %v918 = vpop.xlane.xlu0 %917
          %v919 = vmax.f32 %v915, %v918
          %v920 = vsub.f32 %v915, %v919
          %v921 = vmul.f32 %v920, 1.442695
          %v922 = vpow.pop %v921
          %924 = vset.pattern.permute.xlu0 0
          %925 = vperm.xlu0 %924, %v919
          %v926 = vpop.permute.xlu0 %925
          %v928 = vsub.f32 %v914, %v926
          %v929 = vmul.f32 %v928, 1.442695
          %v930 = vpow.pop %v929
          %v931 = vld [vmem:[#allocation6] sm:$0xff]
          %v932 = vmul.f32 %v922, %v931
          %v933 = vsel %vm682, %v930, 0.0
          %934 = vadd.xlane.f32.xlu0 %v933
          %v935 = vpop.xlane.xlu0 %934
          %v936 = vadd.f32 %v932, %v935
          %937 = vst.msk [vmem:[#allocation6] sm:$0xff] %vm679, %v936
          %v938 = vld [vmem:[#allocation7] sm:$0xff]
          %940 = vset.pattern.permute.xlu0 0
          %941 = vperm.xlu0 %940, %v922
          %v942 = vpop.permute.xlu0 %941
          %v944 = vmul.f32 %v942, %v938
          %v945 = vpack.c.bf16 %v930, %v930
          %v947 = vsel %vm682, %v945, 0
          %vm949 = vcmask 1043456
          %v951 = vsel %vm949, %v861, 0
          %953 = vmatprep.subr.bf16.mxu0 0
          %954 = vmatpush1.bf16.msra.mxu0 %v951
          %955 = vmatprep.subr.bf16.mxu0 0
          %956 = vmatpush1.bf16.msra.mxu0 0
          %957 = vmatprep.subr.bf16.mxu0 0
          %958 = vmatpush1.bf16.msra.mxu0 0
          %959 = vmatprep.subr.bf16.mxu0 0
          %960 = vmatpush1.bf16.msra.mxu0 0
          %961 = vmatprep.subr.bf16.mxu0 0
          %962 = vmatpush1.bf16.msra.mxu0 0
          %963 = vmatprep.subr.bf16.mxu0 0
          %964 = vmatpush1.bf16.msra.mxu0 0
          %965 = vmatprep.subr.bf16.mxu0 0
          %966 = vmatpush1.bf16.msra.mxu0 0
          %967 = vmatprep.subr.bf16.mxu0 0
          %968 = vmatpush1.bf16.msra.mxu0 0
          %969 = vmatprep.subr.bf16.mxu0 0
          %970 = vmatpush1.bf16.msra.mxu0 0
          %971 = vmatprep.subr.bf16.mxu0 0
          %972 = vmatpush1.bf16.msra.mxu0 0
          %973 = vmatprep.subr.bf16.mxu0 0
          %974 = vmatpush1.bf16.msra.mxu0 0
          %975 = vmatprep.subr.bf16.mxu0 0
          %976 = vmatpush1.bf16.msra.mxu0 0
          %977 = vmatprep.subr.bf16.mxu0 0
          %978 = vmatpush1.bf16.msra.mxu0 0
          %979 = vmatprep.subr.bf16.mxu0 0
          %980 = vmatpush1.bf16.msra.mxu0 0
          %981 = vmatprep.subr.bf16.mxu0 0
          %982 = vmatpush1.bf16.msra.mxu0 0
          %983 = vmatprep.subr.bf16.mxu0 0
          %984 = vmatpush1.bf16.msra.mxu0 0
          %985 = vmatprep.mubr.bf16.mxu0 0
          %986 = vmatmul.mubr.bf16.gmra.mrb[0].mxu0 %v947
          %v987 = vpop.f32.mrb[0].mxu0
          %v988 = vadd.f32 0.0, %v987
          %v989 = vpop.f32.mrb[0].mxu0
          %v990 = vpop.f32.mrb[0].mxu0
          %v991 = vpop.f32.mrb[0].mxu0
          %992 = vdwg.mxu0
          %v993 = vadd.f32 %v944, %v988
          %994 = vst.msk [vmem:[#allocation7] sm:$0xff] %vm682, %v993
          %995 = vst.msk [vmem:[#allocation5] sm:$0xff] %vm679, %v919
        $region92: #{tpu_custom_call.1} parent=55 // loop_footer
          %s848 = sadd.s32 %s846, 1
        $region93: #{tpu_custom_call.1} parent=55 // loop_footer_branch
          %845 = sbr.rel target = $region89
        $region94: #{tpu_custom_call.1} parent=55 // loop_exit
          _
        %v996 = vld [vmem:[#allocation7] sm:$0xff]
        %v997 = vld [vmem:[#allocation6] sm:$0xff]
        %v998 = vrcp.pop %v997
        %1000 = vset.pattern.permute.xlu0 0
        %1001 = vperm.xlu0 %1000, %v998
        %v1002 = vpop.permute.xlu0 %1001
        %v1004 = vmul.f32 %v996, %v1002
        %v1005 = vpack.c.bf16 %v1004, %v1004
        %v1007 = vunpack.c.l.b16 %v1005
        %v1008 = vpack.c.b16 %v1007, %v1007
        %1009 = vrot.lane.b32.xlu0 %v1008, 8
        %v1010 = vpop.permute.xlu0 %1009
        %vm1012 = vcmask 126016
        %1013 = vst.msk [vmem:[#allocation4] sm:$0xf] %vm1012, %v1010
        %1014 = vst.msk [vmem:[#allocation5] sm:$0xff] %vm679, -1e+30
        %1015 = vst.msk [vmem:[#allocation6] sm:$0xff] %vm679, 0.0
        %1016 = vst.msk [vmem:[#allocation7] sm:$0xff] %vm682, 0.0
        // While loop
        $region95: #{tpu_custom_call.1} parent=55 // loop_pre_header
          _
        $region96: #{tpu_custom_call.1} parent=55 // loop_header
          %s1018 = sphi 0, %s1020
          %p1019 = scmp.ge.s32.totalorder %s1018, %s678
        $region97: #{tpu_custom_call.1} parent=55 // loop_header_branch
          %1022 = sbr.rel (%p1019) target = $region101
        $region98: #{tpu_custom_call.1} parent=55 // loop_body
          %s1023 = smul.u32 %s1018, 8
          %s1024 = scalar_lea.vmem [#allocation2], 8
          %s1025 = sshra.s32 %s1023, 3
          %s1026 = sand.u32 %s1023, 7
          %s1027 = smul.addr %s1025, 4
          %s1028 = scalar_lea.vmem %s1024, %s1027 [#allocation2]
          %v1029 = vld [vmem:[%s1028] sm:$0xf]
          %s1030 = scalar_lea.vmem [#allocation3], 8
          %s1031 = smul.addr %s1025, 4
          %s1032 = scalar_lea.vmem %s1030, %s1031 [#allocation3]
          %v1033 = vld [vmem:[%s1032] sm:$0xf]
          %1035 = vrot.lane.b32.xlu0 %v671, 112
          %v1036 = vpop.permute.xlu0 %1035
          %v1038 = vsel %vm682, %v1036, 0
          %v1041 = vsel %vm682, %v1029, 0
          %1043 = vmatprep.subr.bf16.mxu0 0
          %1044 = vmatpush1.bf16.xpose.msra.mxu0 %v1041
          %1045 = vmatprep.subr.bf16.mxu0 0
          %1046 = vmatpush1.bf16.xpose.msra.mxu0 0
          %1047 = vmatprep.subr.bf16.mxu0 0
          %1048 = vmatpush1.bf16.xpose.msra.mxu0 0
          %1049 = vmatprep.subr.bf16.mxu0 0
          %1050 = vmatpush1.bf16.xpose.msra.mxu0 0
          %1051 = vmatprep.subr.bf16.mxu0 0
          %1052 = vmatpush1.bf16.xpose.msra.mxu0 0
          %1053 = vmatprep.subr.bf16.mxu0 0
          %1054 = vmatpush1.bf16.xpose.msra.mxu0 0
          %1055 = vmatprep.subr.bf16.mxu0 0
          %1056 = vmatpush1.bf16.xpose.msra.mxu0 0
          %1057 = vmatprep.subr.bf16.mxu0 0
          %1058 = vmatpush1.bf16.xpose.msra.mxu0 0
          %1059 = vmatprep.subr.bf16.mxu0 0
          %1060 = vmatpush1.bf16.xpose.msra.mxu0 0
          %1061 = vmatprep.subr.bf16.mxu0 0
          %1062 = vmatpush1.bf16.xpose.msra.mxu0 0
          %1063 = vmatprep.subr.bf16.mxu0 0
          %1064 = vmatpush1.bf16.xpose.msra.mxu0 0
          %1065 = vmatprep.subr.bf16.mxu0 0
          %1066 = vmatpush1.bf16.xpose.msra.mxu0 0
          %1067 = vmatprep.subr.bf16.mxu0 0
          %1068 = vmatpush1.bf16.xpose.msra.mxu0 0
          %1069 = vmatprep.subr.bf16.mxu0 0
          %1070 = vmatpush1.bf16.xpose.msra.mxu0 0
          %1071 = vmatprep.subr.bf16.mxu0 0
          %1072 = vmatpush1.bf16.xpose.msra.mxu0 0
          %1073 = vmatprep.subr.bf16.mxu0 0
          %1074 = vmatpush1.bf16.xpose.msra.mxu0 0
          %1075 = vmatprep.mubr.bf16.mxu0 0
          %1076 = vmatmul.mubr.bf16.gmra.mrb[0].mxu0 %v1038
          %v1077 = vpop.f32.mrb[0].mxu0
          %v1078 = vadd.f32 0.0, %v1077
          %v1079 = vpop.f32.mrb[0].mxu0
          %v1080 = vpop.f32.mrb[0].mxu0
          %v1081 = vpop.f32.mrb[0].mxu0
          %1082 = vdwg.mxu0
          %v1083 = vstv %s1023
          %v1084 = vadd.s32 %v677, %v1083
          %vm1085 = vcmp.le.s32.totalorder %v1084, %v675
          %v1086 = vsel %vm1085, %v1078, -1e+30
          %v1087 = vld [vmem:[#allocation5] sm:$0xff]
          %v1088 = vsel %vm682, %v1086, -inf
          %1089 = vmax.xlane.f32.xlu0 %v1088
          %v1090 = vpop.xlane.xlu0 %1089
          %v1091 = vmax.f32 %v1087, %v1090
          %v1092 = vsub.f32 %v1087, %v1091
          %v1093 = vmul.f32 %v1092, 1.442695
          %v1094 = vpow.pop %v1093
          %1096 = vset.pattern.permute.xlu0 0
          %1097 = vperm.xlu0 %1096, %v1091
          %v1098 = vpop.permute.xlu0 %1097
          %v1100 = vsub.f32 %v1086, %v1098
          %v1101 = vmul.f32 %v1100, 1.442695
          %v1102 = vpow.pop %v1101
          %v1103 = vld [vmem:[#allocation6] sm:$0xff]
          %v1104 = vmul.f32 %v1094, %v1103
          %v1105 = vsel %vm682, %v1102, 0.0
          %1106 = vadd.xlane.f32.xlu0 %v1105
          %v1107 = vpop.xlane.xlu0 %1106
          %v1108 = vadd.f32 %v1104, %v1107
          %1109 = vst.msk [vmem:[#allocation6] sm:$0xff] %vm679, %v1108
          %v1110 = vld [vmem:[#allocation7] sm:$0xff]
          %1112 = vset.pattern.permute.xlu0 0
          %1113 = vperm.xlu0 %1112, %v1094
          %v1114 = vpop.permute.xlu0 %1113
          %v1116 = vmul.f32 %v1114, %v1110
          %v1117 = vpack.c.bf16 %v1102, %v1102
          %v1119 = vsel %vm682, %v1117, 0
          %vm1121 = vcmask 1043456
          %v1123 = vsel %vm1121, %v1033, 0
          %1125 = vmatprep.subr.bf16.mxu0 0
          %1126 = vmatpush1.bf16.msra.mxu0 %v1123
          %1127 = vmatprep.subr.bf16.mxu0 0
          %1128 = vmatpush1.bf16.msra.mxu0 0
          %1129 = vmatprep.subr.bf16.mxu0 0
          %1130 = vmatpush1.bf16.msra.mxu0 0
          %1131 = vmatprep.subr.bf16.mxu0 0
          %1132 = vmatpush1.bf16.msra.mxu0 0
          %1133 = vmatprep.subr.bf16.mxu0 0
          %1134 = vmatpush1.bf16.msra.mxu0 0
          %1135 = vmatprep.subr.bf16.mxu0 0
          %1136 = vmatpush1.bf16.msra.mxu0 0
          %1137 = vmatprep.subr.bf16.mxu0 0
          %1138 = vmatpush1.bf16.msra.mxu0 0
          %1139 = vmatprep.subr.bf16.mxu0 0
          %1140 = vmatpush1.bf16.msra.mxu0 0
          %1141 = vmatprep.subr.bf16.mxu0 0
          %1142 = vmatpush1.bf16.msra.mxu0 0
          %1143 = vmatprep.subr.bf16.mxu0 0
          %1144 = vmatpush1.bf16.msra.mxu0 0
          %1145 = vmatprep.subr.bf16.mxu0 0
          %1146 = vmatpush1.bf16.msra.mxu0 0
          %1147 = vmatprep.subr.bf16.mxu0 0
          %1148 = vmatpush1.bf16.msra.mxu0 0
          %1149 = vmatprep.subr.bf16.mxu0 0
          %1150 = vmatpush1.bf16.msra.mxu0 0
          %1151 = vmatprep.subr.bf16.mxu0 0
          %1152 = vmatpush1.bf16.msra.mxu0 0
          %1153 = vmatprep.subr.bf16.mxu0 0
          %1154 = vmatpush1.bf16.msra.mxu0 0
          %1155 = vmatprep.subr.bf16.mxu0 0
          %1156 = vmatpush1.bf16.msra.mxu0 0
          %1157 = vmatprep.mubr.bf16.mxu0 0
          %1158 = vmatmul.mubr.bf16.gmra.mrb[0].mxu0 %v1119
          %v1159 = vpop.f32.mrb[0].mxu0
          %v1160 = vadd.f32 0.0, %v1159
          %v1161 = vpop.f32.mrb[0].mxu0
          %v1162 = vpop.f32.mrb[0].mxu0
          %v1163 = vpop.f32.mrb[0].mxu0
          %1164 = vdwg.mxu0
          %v1165 = vadd.f32 %v1116, %v1160
          %1166 = vst.msk [vmem:[#allocation7] sm:$0xff] %vm682, %v1165
          %1167 = vst.msk [vmem:[#allocation5] sm:$0xff] %vm679, %v1091
        $region99: #{tpu_custom_call.1} parent=55 // loop_footer
          %s1020 = sadd.s32 %s1018, 1
        $region100: #{tpu_custom_call.1} parent=55 // loop_footer_branch
          %1017 = sbr.rel target = $region96
        $region101: #{tpu_custom_call.1} parent=55 // loop_exit
          _
        %v1168 = vld [vmem:[#allocation7] sm:$0xff]
        %v1169 = vld [vmem:[#allocation6] sm:$0xff]
        %v1170 = vrcp.pop %v1169
        %1172 = vset.pattern.permute.xlu0 0
        %1173 = vperm.xlu0 %1172, %v1170
        %v1174 = vpop.permute.xlu0 %1173
        %v1176 = vmul.f32 %v1168, %v1174
        %v1177 = vpack.c.bf16 %v1176, %v1176
        %v1179 = vunpack.c.l.b16 %v1177
        %v1180 = vpack.c.b16 %v1179, %v1179
        %1181 = vrot.lane.b32.xlu0 %v1180, 16
        %v1182 = vpop.permute.xlu0 %1181
        %vm1184 = vcmask 191616
        %1185 = vst.msk [vmem:[#allocation4] sm:$0xf] %vm1184, %v1182
        %1186 = vst.msk [vmem:[#allocation5] sm:$0xff] %vm679, -1e+30
        %1187 = vst.msk [vmem:[#allocation6] sm:$0xff] %vm679, 0.0
        %1188 = vst.msk [vmem:[#allocation7] sm:$0xff] %vm682, 0.0
        // While loop
        $region102: #{tpu_custom_call.1} parent=55 // loop_pre_header
          _
        $region103: #{tpu_custom_call.1} parent=55 // loop_header
          %s1190 = sphi 0, %s1192
          %p1191 = scmp.ge.s32.totalorder %s1190, %s678
        $region104: #{tpu_custom_call.1} parent=55 // loop_header_branch
          %1194 = sbr.rel (%p1191) target = $region108
        $region105: #{tpu_custom_call.1} parent=55 // loop_body
          %s1195 = smul.u32 %s1190, 8
          %s1196 = scalar_lea.vmem [#allocation2], 12
          %s1197 = sshra.s32 %s1195, 3
          %s1198 = sand.u32 %s1195, 7
          %s1199 = smul.addr %s1197, 4
          %s1200 = scalar_lea.vmem %s1196, %s1199 [#allocation2]
          %v1201 = vld [vmem:[%s1200] sm:$0xf]
          %s1202 = scalar_lea.vmem [#allocation3], 12
          %s1203 = smul.addr %s1197, 4
          %s1204 = scalar_lea.vmem %s1202, %s1203 [#allocation3]
          %v1205 = vld [vmem:[%s1204] sm:$0xf]
          %1207 = vrot.lane.b32.xlu0 %v671, 104
          %v1208 = vpop.permute.xlu0 %1207
          %v1210 = vsel %vm682, %v1208, 0
          %v1213 = vsel %vm682, %v1201, 0
          %1215 = vmatprep.subr.bf16.mxu0 0
          %1216 = vmatpush1.bf16.xpose.msra.mxu0 %v1213
          %1217 = vmatprep.subr.bf16.mxu0 0
          %1218 = vmatpush1.bf16.xpose.msra.mxu0 0
          %1219 = vmatprep.subr.bf16.mxu0 0
          %1220 = vmatpush1.bf16.xpose.msra.mxu0 0
          %1221 = vmatprep.subr.bf16.mxu0 0
          %1222 = vmatpush1.bf16.xpose.msra.mxu0 0
          %1223 = vmatprep.subr.bf16.mxu0 0
          %1224 = vmatpush1.bf16.xpose.msra.mxu0 0
          %1225 = vmatprep.subr.bf16.mxu0 0
          %1226 = vmatpush1.bf16.xpose.msra.mxu0 0
          %1227 = vmatprep.subr.bf16.mxu0 0
          %1228 = vmatpush1.bf16.xpose.msra.mxu0 0
          %1229 = vmatprep.subr.bf16.mxu0 0
          %1230 = vmatpush1.bf16.xpose.msra.mxu0 0
          %1231 = vmatprep.subr.bf16.mxu0 0
          %1232 = vmatpush1.bf16.xpose.msra.mxu0 0
          %1233 = vmatprep.subr.bf16.mxu0 0
          %1234 = vmatpush1.bf16.xpose.msra.mxu0 0
          %1235 = vmatprep.subr.bf16.mxu0 0
          %1236 = vmatpush1.bf16.xpose.msra.mxu0 0
          %1237 = vmatprep.subr.bf16.mxu0 0
          %1238 = vmatpush1.bf16.xpose.msra.mxu0 0
          %1239 = vmatprep.subr.bf16.mxu0 0
          %1240 = vmatpush1.bf16.xpose.msra.mxu0 0
          %1241 = vmatprep.subr.bf16.mxu0 0
          %1242 = vmatpush1.bf16.xpose.msra.mxu0 0
          %1243 = vmatprep.subr.bf16.mxu0 0
          %1244 = vmatpush1.bf16.xpose.msra.mxu0 0
          %1245 = vmatprep.subr.bf16.mxu0 0
          %1246 = vmatpush1.bf16.xpose.msra.mxu0 0
          %1247 = vmatprep.mubr.bf16.mxu0 0
          %1248 = vmatmul.mubr.bf16.gmra.mrb[0].mxu0 %v1210
          %v1249 = vpop.f32.mrb[0].mxu0
          %v1250 = vadd.f32 0.0, %v1249
          %v1251 = vpop.f32.mrb[0].mxu0
          %v1252 = vpop.f32.mrb[0].mxu0
          %v1253 = vpop.f32.mrb[0].mxu0
          %1254 = vdwg.mxu0
          %v1255 = vstv %s1195
          %v1256 = vadd.s32 %v677, %v1255
          %vm1257 = vcmp.le.s32.totalorder %v1256, %v675
          %v1258 = vsel %vm1257, %v1250, -1e+30
          %v1259 = vld [vmem:[#allocation5] sm:$0xff]
          %v1260 = vsel %vm682, %v1258, -inf
          %1261 = vmax.xlane.f32.xlu0 %v1260
          %v1262 = vpop.xlane.xlu0 %1261
          %v1263 = vmax.f32 %v1259, %v1262
          %v1264 = vsub.f32 %v1259, %v1263
          %v1265 = vmul.f32 %v1264, 1.442695
          %v1266 = vpow.pop %v1265
          %1268 = vset.pattern.permute.xlu0 0
          %1269 = vperm.xlu0 %1268, %v1263
          %v1270 = vpop.permute.xlu0 %1269
          %v1272 = vsub.f32 %v1258, %v1270
          %v1273 = vmul.f32 %v1272, 1.442695
          %v1274 = vpow.pop %v1273
          %v1275 = vld [vmem:[#allocation6] sm:$0xff]
          %v1276 = vmul.f32 %v1266, %v1275
          %v1277 = vsel %vm682, %v1274, 0.0
          %1278 = vadd.xlane.f32.xlu0 %v1277
          %v1279 = vpop.xlane.xlu0 %1278
          %v1280 = vadd.f32 %v1276, %v1279
          %1281 = vst.msk [vmem:[#allocation6] sm:$0xff] %vm679, %v1280
          %v1282 = vld [vmem:[#allocation7] sm:$0xff]
          %1284 = vset.pattern.permute.xlu0 0
          %1285 = vperm.xlu0 %1284, %v1266
          %v1286 = vpop.permute.xlu0 %1285
          %v1288 = vmul.f32 %v1286, %v1282
          %v1289 = vpack.c.bf16 %v1274, %v1274
          %v1291 = vsel %vm682, %v1289, 0
          %vm1293 = vcmask 1043456
          %v1295 = vsel %vm1293, %v1205, 0
          %1297 = vmatprep.subr.bf16.mxu0 0
          %1298 = vmatpush1.bf16.msra.mxu0 %v1295
          %1299 = vmatprep.subr.bf16.mxu0 0
          %1300 = vmatpush1.bf16.msra.mxu0 0
          %1301 = vmatprep.subr.bf16.mxu0 0
          %1302 = vmatpush1.bf16.msra.mxu0 0
          %1303 = vmatprep.subr.bf16.mxu0 0
          %1304 = vmatpush1.bf16.msra.mxu0 0
          %1305 = vmatprep.subr.bf16.mxu0 0
          %1306 = vmatpush1.bf16.msra.mxu0 0
          %1307 = vmatprep.subr.bf16.mxu0 0
          %1308 = vmatpush1.bf16.msra.mxu0 0
          %1309 = vmatprep.subr.bf16.mxu0 0
          %1310 = vmatpush1.bf16.msra.mxu0 0
          %1311 = vmatprep.subr.bf16.mxu0 0
          %1312 = vmatpush1.bf16.msra.mxu0 0
          %1313 = vmatprep.subr.bf16.mxu0 0
          %1314 = vmatpush1.bf16.msra.mxu0 0
          %1315 = vmatprep.subr.bf16.mxu0 0
          %1316 = vmatpush1.bf16.msra.mxu0 0
          %1317 = vmatprep.subr.bf16.mxu0 0
          %1318 = vmatpush1.bf16.msra.mxu0 0
          %1319 = vmatprep.subr.bf16.mxu0 0
          %1320 = vmatpush1.bf16.msra.mxu0 0
          %1321 = vmatprep.subr.bf16.mxu0 0
          %1322 = vmatpush1.bf16.msra.mxu0 0
          %1323 = vmatprep.subr.bf16.mxu0 0
          %1324 = vmatpush1.bf16.msra.mxu0 0
          %1325 = vmatprep.subr.bf16.mxu0 0
          %1326 = vmatpush1.bf16.msra.mxu0 0
          %1327 = vmatprep.subr.bf16.mxu0 0
          %1328 = vmatpush1.bf16.msra.mxu0 0
          %1329 = vmatprep.mubr.bf16.mxu0 0
          %1330 = vmatmul.mubr.bf16.gmra.mrb[0].mxu0 %v1291
          %v1331 = vpop.f32.mrb[0].mxu0
          %v1332 = vadd.f32 0.0, %v1331
          %v1333 = vpop.f32.mrb[0].mxu0
          %v1334 = vpop.f32.mrb[0].mxu0
          %v1335 = vpop.f32.mrb[0].mxu0
          %1336 = vdwg.mxu0
          %v1337 = vadd.f32 %v1288, %v1332
          %1338 = vst.msk [vmem:[#allocation7] sm:$0xff] %vm682, %v1337
          %1339 = vst.msk [vmem:[#allocation5] sm:$0xff] %vm679, %v1263
        $region106: #{tpu_custom_call.1} parent=55 // loop_footer
          %s1192 = sadd.s32 %s1190, 1
        $region107: #{tpu_custom_call.1} parent=55 // loop_footer_branch
          %1189 = sbr.rel target = $region103
        $region108: #{tpu_custom_call.1} parent=55 // loop_exit
          _
        %v1340 = vld [vmem:[#allocation7] sm:$0xff]
        %v1341 = vld [vmem:[#allocation6] sm:$0xff]
        %v1342 = vrcp.pop %v1341
        %1344 = vset.pattern.permute.xlu0 0
        %1345 = vperm.xlu0 %1344, %v1342
        %v1346 = vpop.permute.xlu0 %1345
        %v1348 = vmul.f32 %v1340, %v1346
        %v1349 = vpack.c.bf16 %v1348, %v1348
        %v1351 = vunpack.c.l.b16 %v1349
        %v1352 = vpack.c.b16 %v1351, %v1351
        %1353 = vrot.lane.b32.xlu0 %v1352, 24
        %v1354 = vpop.permute.xlu0 %1353
        %vm1356 = vcmask 257216
        %1357 = vst.msk [vmem:[#allocation4] sm:$0xf] %vm1356, %v1354
        %v1358 = vld [vmem:[#allocation4] sm:$0xf]
        %v1359 = vld [vmem:[#allocation16] sm:$0xf]
        %v1360 = vld [vmem:[#allocation16 + $0x4] sm:$0xf]
        %v1361 = vld [vmem:[#allocation16 + $0x8] sm:$0xf]
        %v1362 = vld [vmem:[#allocation16 + $0xc] sm:$0xf]
        %v1363 = vld [vmem:[%s8] sm:$0x1]
        %v1365 = vlaneseq
        %v1366 = vshrl.u32 %v1365, 7
        %v1367 = vsub.s32 0, %v1366
        %v1368 = vrot.slane %v1363, %v1367
        %v1374 = vunpack.c.l.b16 %v1359
        %v1375 = vunpack.c.l.b16 %v1360
        %v1376 = vunpack.c.l.b16 %v1361
        %v1377 = vunpack.c.l.b16 %v1362
        %v1378 = vpack.c.b16 %v1375, %v1374
        %v1379 = vpack.c.b16 %v1377, %v1376
        %v1383 = vsel %vm626, %v1358, 0
        %1385 = vmatprep.subr.bf16.mxu0 0
        %1386 = vmatpush1.bf16.msra.mxu0 %v1378
        %1387 = vmatprep.subr.bf16.mxu0 0
        %1388 = vmatpush1.bf16.msra.mxu0 %v1379
        %1389 = vmatprep.subr.bf16.mxu0 0
        %1390 = vmatpush1.bf16.msra.mxu0 0
        %1391 = vmatprep.subr.bf16.mxu0 0
        %1392 = vmatpush1.bf16.msra.mxu0 0
        %1393 = vmatprep.subr.bf16.mxu0 0
        %1394 = vmatpush1.bf16.msra.mxu0 0
        %1395 = vmatprep.subr.bf16.mxu0 0
        %1396 = vmatpush1.bf16.msra.mxu0 0
        %1397 = vmatprep.subr.bf16.mxu0 0
        %1398 = vmatpush1.bf16.msra.mxu0 0
        %1399 = vmatprep.subr.bf16.mxu0 0
        %1400 = vmatpush1.bf16.msra.mxu0 0
        %1401 = vmatprep.subr.bf16.mxu0 0
        %1402 = vmatpush1.bf16.msra.mxu0 0
        %1403 = vmatprep.subr.bf16.mxu0 0
        %1404 = vmatpush1.bf16.msra.mxu0 0
        %1405 = vmatprep.subr.bf16.mxu0 0
        %1406 = vmatpush1.bf16.msra.mxu0 0
        %1407 = vmatprep.subr.bf16.mxu0 0
        %1408 = vmatpush1.bf16.msra.mxu0 0
        %1409 = vmatprep.subr.bf16.mxu0 0
        %1410 = vmatpush1.bf16.msra.mxu0 0
        %1411 = vmatprep.subr.bf16.mxu0 0
        %1412 = vmatpush1.bf16.msra.mxu0 0
        %1413 = vmatprep.subr.bf16.mxu0 0
        %1414 = vmatpush1.bf16.msra.mxu0 0
        %1415 = vmatprep.subr.bf16.mxu0 0
        %1416 = vmatpush1.bf16.msra.mxu0 0
        %1417 = vmatprep.mubr.bf16.mxu0 0
        %1418 = vmatmul.mubr.bf16.gmra.mrb[0].mxu0 %v1383
        %v1419 = vpop.f32.mrb[0].mxu0
        %v1420 = vadd.f32 %v1368, %v1419
        %v1421 = vpop.f32.mrb[0].mxu0
        %v1422 = vpop.f32.mrb[0].mxu0
        %v1423 = vpop.f32.mrb[0].mxu0
        %1424 = vdwg.mxu0
        %1425 = vst.msk [vmem:[%s419] sm:$0xff] %vm626, %v1420
        %s1426 = sand.u32 %s244, 1
        %s1427 = scalar_lea.sflag [#allocation10], %s1426
        %s1428 = sand.u32 %s244, 1
        %s1429 = smul.addr %s1428, 8
        %s1430 = scalar_lea.vmem [#allocation17], %s1429
        // Predicated region
        $region109: #{tpu_custom_call.1} parent=55 // pred_check
          %p1431 = pneg %p254
        $region110: #{tpu_custom_call.1} parent=55 // pred_check_branch
          %1433 = sbr.rel (%p1431) target = $region112
        $region111: #{tpu_custom_call.1} parent=55 // pred_region
          %s1435 = ssub.s32 128, 128
          %1436 = vsyncadd %s1427, %s1435
          %s1437 = sadd.s32 %s33, %s32
          %s1438 = smul.addr %s1437, 128
          %s1439 = scalar_lea.hbm %s9, %s1438
          %s1441 = sshll.u32 %s1430, 4
          %s1442 = int_to_ptr.vmem [resolvable:$true] %s1441
          %1444 = dma.vmem_to_hbm [thread:$0]  %s1442, 128, %s1439, %s1427
        $region112: #{tpu_custom_call.1} parent=55 // pred_fallthru
          _
      $region56: #{tpu_custom_call.1} parent=5 // pred_fallthru
        _
      %p1445 = scmp.le.s32.totalorder 2, %s23
      // Predicated region
      $region113: #{tpu_custom_call.1} parent=5 // pred_check
        %p1446 = pneg %p1445
      $region114: #{tpu_custom_call.1} parent=5 // pred_check_branch
        %1448 = sbr.rel (%p1446) target = $region116
      $region115: #{tpu_custom_call.1} parent=5 // pred_region
        %s1449 = ssub.s32 %s23, 2
        // Predicated region
        $region117: #{tpu_custom_call.1} parent=115 // pred_check
          %p1450 = pneg %p260
        $region118: #{tpu_custom_call.1} parent=115 // pred_check_branch
          %1452 = sbr.rel (%p1450) target = $region120
        $region119: #{tpu_custom_call.1} parent=115 // pred_region
          %s1453 = sand.u32 %s245, 1
          %s1454 = scalar_lea.sflag [#allocation10], %s1453
          %s1455 = sand.u32 %s245, 1
          %s1456 = smul.addr %s1455, 8
          %s1457 = scalar_lea.vmem [#allocation17], %s1456
          %1458 = dma.done %s1454, 128
        $region120: #{tpu_custom_call.1} parent=115 // pred_fallthru
          _
      $region116: #{tpu_custom_call.1} parent=5 // pred_fallthru
        _
    $region6: #{tpu_custom_call.1} parent=1 // loop_footer
      %s27 = sadd.s32 1, %s23
    $region7: #{tpu_custom_call.1} parent=1 // loop_footer_branch
      %22 = sbr.rel target = $region3
    $region8: #{tpu_custom_call.1} parent=1 // loop_exit
      _
    %1459 = vsyncpa [#allocation9], 1
    %s1460 = scalar_lea.sflag [#allocation9], 1
    %1461 = vsyncpa %s1460, 1
    %1462 = vsyncpa [#allocation12], 1
    %1463 = vsyncpa [#allocation15], 1
    %1464 = vsyncpa [#allocation10], 1
    %s1465 = scalar_lea.sflag [#allocation10], 1
    %1466 = vsyncpa %s1465, 1

</llo_original>
